<compile_context>
chip_gen: v7x
topology: tpu7x:2x2x1
jax: 0.10.0
libtpu: 0.0.40
codegen_flags: <defaults>
</compile_context>

<pallas_src>
import jax
import jax.numpy as jnp
from jax import lax
from jax.experimental import pallas as pl
from jax.experimental.pallas import tpu as pltpu


def _conv3x3_bn_relu(slab_p, rows_out, w9, scale, shift):
    """3x3 stride-1 conv + folded-BN + ReLU on a zero-padded slab.

    slab_p: (rows_out + 2, W + 2, C) bf16   -- 1-px zero halo on both axes
    w9:     (9*C, C) bf16                   -- HWIO weights, tap-major (dy, dx, ci)
    scale:  (1, C) f32,  shift: (1, C) f32  -- folded BatchNorm (+ conv bias)
    returns (rows_out * W, C) f32
    """
    _, w_p, c = slab_p.shape
    w = w_p - 2
    # im2col: 9 shifted views concatenated along channels -> one MXU dot with
    # K = 9*C (instead of 9 tiny K=C dots + per-tap relayout reshapes).
    taps = []
    for dy in range(3):
        for dx in range(3):
            taps.append(slab_p[dy:dy + rows_out, dx:dx + w, :])
    patches = jnp.concatenate(taps, axis=-1)            # (rows_out, W, 9C)
    patches = patches.reshape(rows_out * w, 9 * c)      # layout-free when W % 8 == 0
    acc = jnp.dot(patches, w9, preferred_element_type=jnp.float32)
    return jnp.maximum(acc * scale + shift, 0.0)        # eval-mode BN + ReLU (f32)


def _refine_kernel(x_ref, xt_ref, xb_ref,
                   w1_ref, s1_ref, t1_ref,
                   w2_ref, s2_ref, t2_ref,
                   out_ref):
    _, th, w, c = x_ref.shape
    h = pl.program_id(1)
    nh = pl.num_programs(1)
    at_top = h == 0
    at_bot = h == nh - 1

    # (TH+4, W, C) input slab: tile rows plus a 2-row halo above and below
    # (real neighbour rows, or zeros at the frame boundary == conv zero pad).
    top = jnp.where(at_top, 0.0, xt_ref[0])
    bot = jnp.where(at_bot, 0.0, xb_ref[0])
    slab = jnp.concatenate([top, x_ref[0], bot], axis=0).astype(jnp.bfloat16)

    zc = jnp.zeros((th + 4, 1, c), jnp.bfloat16)
    slab = jnp.concatenate([zc, slab, zc], axis=1)       # zero pad in W

    # conv1 + BN + ReLU over TH+2 rows (the extra +/-1 row is conv2's halo).
    mid = _conv3x3_bn_relu(slab, th + 2, w1_ref[...], s1_ref[...], t1_ref[...])
    mid = mid.reshape(th + 2, w, c)

    # conv2 must see *zero* padding outside the frame (not conv1-of-padding):
    # zero the mid halo rows that fall outside [0, H).
    row_t = jnp.where(at_top, 0.0, mid[0:1])
    row_b = jnp.where(at_bot, 0.0, mid[th + 1:th + 2])
    mid = jnp.concatenate([row_t, mid[1:th + 1], row_b], axis=0).astype(jnp.bfloat16)

    zc2 = jnp.zeros((th + 2, 1, c), jnp.bfloat16)
    mid = jnp.concatenate([zc2, mid, zc2], axis=1)       # zero pad in W

    out = _conv3x3_bn_relu(mid, th, w2_ref[...], s2_ref[...], t2_ref[...])
    out_ref[0] = out.reshape(th, w, c).astype(out_ref.dtype)


def _pick_tile_h(h_total, target):
    """Largest multiple-of-8 divisor of H that is <= target (else the full H)."""
    best = None
    for th in range(8, min(h_total, target) + 1, 8):
        if h_total % th == 0:
            best = th
    return best if best is not None else h_total


def refinement_block_nhwc(x_nhwc, params, *, tile_h_target=64):
    """Fused RefinementBlock on an NHWC tensor; one grid step per (batch, H-tile)."""
    w1, s1, t1, w2, s2, t2 = params
    n, h_total, w_total, c = x_nhwc.shape
    assert h_total >= 2, "RefinementBlock kernel needs H >= 2"

    th = _pick_tile_h(h_total, tile_h_target)
    n_h = h_total // th
    th2 = th // 2        # halo blocks are 2 rows; their H index is in 2-row units

    # im2col weight layout: (3, 3, Cin, Cout) -> (9*Cin, Cout), bf16 for the MXU.
    w1_9 = w1.reshape(9 * c, c).astype(jnp.bfloat16)
    w2_9 = w2.reshape(9 * c, c).astype(jnp.bfloat16)
    s1 = jnp.reshape(s1, (1, c)).astype(jnp.float32)
    t1 = jnp.reshape(t1, (1, c)).astype(jnp.float32)
    s2 = jnp.reshape(s2, (1, c)).astype(jnp.float32)
    t2 = jnp.reshape(t2, (1, c)).astype(jnp.float32)

    x_main = pl.BlockSpec((1, th, w_total, c), lambda b, i: (b, i, 0, 0))
    # 2-row halos above/below the tile; index is clamped at the frame boundary
    # and the rows are zero-masked in-kernel (== the conv's zero padding in H).
    x_top = pl.BlockSpec(
        (1, 2, w_total, c),
        lambda b, i: (b, jnp.maximum(i * th2 - 1, 0), 0, 0))
    x_bot = pl.BlockSpec(
        (1, 2, w_total, c),
        lambda b, i: (b, jnp.minimum((i + 1) * th2, h_total // 2 - 1), 0, 0))
    w_spec = pl.BlockSpec((9 * c, c), lambda b, i: (0, 0))
    v_spec = pl.BlockSpec((1, c), lambda b, i: (0, 0))
    out_spec = pl.BlockSpec((1, th, w_total, c), lambda b, i: (b, i, 0, 0))

    flops = 2 * 2 * 9 * c * c * h_total * w_total * n          # two 3x3 convs
    bytes_accessed = (2 * n * h_total * w_total * c * 4        # x read + out write
                      + 2 * 9 * c * c * 2 + 4 * c * 4)         # weights + scales

    return pl.pallas_call(
        _refine_kernel,
        out_shape=jax.ShapeDtypeStruct((n, h_total, w_total, c), x_nhwc.dtype),
        grid_spec=pltpu.PrefetchScalarGridSpec(
            num_scalar_prefetch=0,
            grid=(n, n_h),
            in_specs=[x_main, x_top, x_bot,
                      w_spec, v_spec, v_spec,
                      w_spec, v_spec, v_spec],
            out_specs=out_spec,
        ),
        compiler_params=pltpu.CompilerParams(
            dimension_semantics=("parallel", "parallel"),
            vmem_limit_bytes=32 * 1024 * 1024,
        ),
        cost_estimate=pl.CostEstimate(
            flops=int(flops), transcendentals=0,
            bytes_accessed=int(bytes_accessed)),
    )(x_nhwc, x_nhwc, x_nhwc, w1_9, s1, t1, w2_9, s2, t2)


def refinement_block_nchw(x_nchw, params, *, tile_h_target=64):
    """PyTorch-style entry point: NCHW in, NCHW out."""
    x_nhwc = jnp.transpose(x_nchw, (0, 2, 3, 1))
    y_nhwc = refinement_block_nhwc(x_nhwc, params, tile_h_target=tile_h_target)
    return jnp.transpose(y_nhwc, (0, 3, 1, 2))


def init_params(key, c, eps=1e-5):
    """Deterministic synthetic params. Returns folded (w, scale, shift) per layer."""
    ks = jax.random.split(key, 12)

    def layer(kw, kb, kg, kbe, km, kv):
        w = 0.1 * jax.random.normal(kw, (3, 3, c, c), jnp.float32)       # HWIO
        b = 0.1 * jax.random.normal(kb, (c,), jnp.float32)               # conv bias
        gamma = 1.0 + 0.1 * jax.random.normal(kg, (c,), jnp.float32)     # BN weight
        beta = 0.1 * jax.random.normal(kbe, (c,), jnp.float32)           # BN bias
        mean = 0.1 * jax.random.normal(km, (c,), jnp.float32)            # running_mean
        var = 1.0 + 0.1 * jnp.abs(jax.random.normal(kv, (c,), jnp.float32))  # running_var
        scale = gamma / jnp.sqrt(var + eps)
        shift = (b - mean) * scale + beta
        return w, scale.reshape(1, c), shift.reshape(1, c)

    w1, s1, t1 = layer(*ks[0:6])
    w2, s2, t2 = layer(*ks[6:12])
    return (w1, s1, t1, w2, s2, t2)


def reference_nhwc(x, params):
    """Pure-JAX reference (lax.conv). Weights are bf16-rounded like the kernel's,
    so the tolerance only has to absorb activation rounding."""
    w1, s1, t1, w2, s2, t2 = params
    w1q = w1.astype(jnp.bfloat16).astype(jnp.float32)
    w2q = w2.astype(jnp.bfloat16).astype(jnp.float32)

    def conv(a, w):
        return lax.conv_general_dilated(
            a, w, window_strides=(1, 1), padding="SAME",
            dimension_numbers=("NHWC", "HWIO", "NHWC"))

    y = jnp.maximum(conv(x, w1q) * s1 + t1, 0.0)
    return jnp.maximum(conv(y, w2q) * s2 + t2, 0.0)


if __name__ == "__main__":
    N, C, H, W = 2, 4, 16, 16
    key = jax.random.PRNGKey(0)
    kx, kp = jax.random.split(key)

    x_nchw = jax.random.normal(kx, (N, C, H, W), jnp.float32)
    params = init_params(kp, C)

    # Small tile target so the multi-tile halo path (grid = (N, 2)) is exercised.
    out = refinement_block_nchw(x_nchw, params, tile_h_target=8)
    out = jax.block_until_ready(out)
    # Single-tile run must match the tiled run exactly (validates halo handling).
    out_single = jax.block_until_ready(
        refinement_block_nchw(x_nchw, params, tile_h_target=H))

    x_nhwc = jnp.transpose(x_nchw, (0, 2, 3, 1))
    ref = jnp.transpose(reference_nhwc(x_nhwc, params), (0, 3, 1, 2))

    assert out.shape == (N, C, H, W)
    assert jnp.allclose(out, out_single, atol=1e-5, rtol=1e-5), "H-tiling mismatch"
    assert jnp.allclose(out, ref, atol=2e-2, rtol=2e-2), "mismatch vs reference"

    print("KERNEL_OK")
</pallas_src>

<mosaic_0001>
module attributes {stable_mosaic.version = 11 : i64} {
  func.func @_refine_kernel(%arg0: i32, %arg1: i32, %arg2: memref<1x8x16x4xf32, #tpu.memory_space<vmem>>, %arg3: memref<1x2x16x4xf32, #tpu.memory_space<vmem>>, %arg4: memref<1x2x16x4xf32, #tpu.memory_space<vmem>>, %arg5: memref<36x4xbf16, #tpu.memory_space<vmem>>, %arg6: memref<1x4xf32, #tpu.memory_space<vmem>>, %arg7: memref<1x4xf32, #tpu.memory_space<vmem>>, %arg8: memref<36x4xbf16, #tpu.memory_space<vmem>>, %arg9: memref<1x4xf32, #tpu.memory_space<vmem>>, %arg10: memref<1x4xf32, #tpu.memory_space<vmem>>, %arg11: memref<1x8x16x4xf32, #tpu.memory_space<vmem>>) attributes {dimension_semantics = [#tpu.dimension_semantics<parallel>, #tpu.dimension_semantics<parallel>], iteration_bounds = array<i64: 2, 2>, scalar_prefetch = 0 : i64, scratch_operands = 0 : i64, tpu.core_type = #tpu.core_type<tc>, window_params = [{transform_indices = @transform_0, window_bounds = array<i64: 1, 8, 16, 4>}, {transform_indices = @transform_1, window_bounds = array<i64: 1, 2, 16, 4>}, {transform_indices = @transform_2, window_bounds = array<i64: 1, 2, 16, 4>}, {pipeline_mode = #tpu.pipeline_mode<synchronous>, transform_indices = @transform_3, window_bounds = array<i64: 36, 4>}, {pipeline_mode = #tpu.pipeline_mode<synchronous>, transform_indices = @transform_4, window_bounds = array<i64: 1, 4>}, {pipeline_mode = #tpu.pipeline_mode<synchronous>, transform_indices = @transform_5, window_bounds = array<i64: 1, 4>}, {pipeline_mode = #tpu.pipeline_mode<synchronous>, transform_indices = @transform_6, window_bounds = array<i64: 36, 4>}, {pipeline_mode = #tpu.pipeline_mode<synchronous>, transform_indices = @transform_7, window_bounds = array<i64: 1, 4>}, {pipeline_mode = #tpu.pipeline_mode<synchronous>, transform_indices = @transform_8, window_bounds = array<i64: 1, 4>}, {transform_indices = @transform_9, window_bounds = array<i64: 1, 8, 16, 4>}]} {
    %c0_i32 = arith.constant 0 : i32
    %0 = arith.cmpi eq, %arg1, %c0_i32 : i32
    %c1_i32 = arith.constant 1 : i32
    %1 = arith.cmpi eq, %arg1, %c1_i32 : i32
    %c0 = arith.constant 0 : index
    %c0_0 = arith.constant 0 : index
    %c0_1 = arith.constant 0 : index
    %c0_2 = arith.constant 0 : index
    %2 = vector.load %arg3[%c0, %c0_0, %c0_1, %c0_2] : memref<1x2x16x4xf32, #tpu.memory_space<vmem>>, vector<1x2x16x4xf32>
    %3 = vector.shape_cast %2 : vector<1x2x16x4xf32> to vector<2x16x4xf32>
    %cst = arith.constant 0.000000e+00 : f32
    %4 = vector.broadcast %cst : f32 to vector<2x16x4xf32>
    %5 = arith.select %0, %4, %3 : vector<2x16x4xf32>
    %c0_3 = arith.constant 0 : index
    %c0_4 = arith.constant 0 : index
    %c0_5 = arith.constant 0 : index
    %c0_6 = arith.constant 0 : index
    %6 = vector.load %arg4[%c0_3, %c0_4, %c0_5, %c0_6] : memref<1x2x16x4xf32, #tpu.memory_space<vmem>>, vector<1x2x16x4xf32>
    %7 = vector.shape_cast %6 : vector<1x2x16x4xf32> to vector<2x16x4xf32>
    %cst_7 = arith.constant 0.000000e+00 : f32
    %8 = vector.broadcast %cst_7 : f32 to vector<2x16x4xf32>
    %9 = arith.select %1, %8, %7 : vector<2x16x4xf32>
    %c0_8 = arith.constant 0 : index
    %c0_9 = arith.constant 0 : index
    %c0_10 = arith.constant 0 : index
    %c0_11 = arith.constant 0 : index
    %10 = vector.load %arg2[%c0_8, %c0_9, %c0_10, %c0_11] : memref<1x8x16x4xf32, #tpu.memory_space<vmem>>, vector<1x8x16x4xf32>
    %11 = vector.shape_cast %10 : vector<1x8x16x4xf32> to vector<8x16x4xf32>
    %12 = tpu.concatenate %5, %11, %9 in 0 : vector<2x16x4xf32>, vector<8x16x4xf32>, vector<2x16x4xf32> -> vector<12x16x4xf32>
    %13 = arith.truncf %12 : vector<12x16x4xf32> to vector<12x16x4xbf16>
    %cst_12 = arith.constant 0.000000e+00 : bf16
    %14 = vector.broadcast %cst_12 : bf16 to vector<12x1x4xbf16>
    %15 = tpu.concatenate %14, %13, %14 in 1 : vector<12x1x4xbf16>, vector<12x16x4xbf16>, vector<12x1x4xbf16> -> vector<12x18x4xbf16>
    %c0_13 = arith.constant 0 : index
    %c0_14 = arith.constant 0 : index
    %16 = vector.load %arg5[%c0_13, %c0_14] : memref<36x4xbf16, #tpu.memory_space<vmem>>, vector<36x4xbf16>
    %c0_15 = arith.constant 0 : index
    %c0_16 = arith.constant 0 : index
    %17 = vector.load %arg6[%c0_15, %c0_16] : memref<1x4xf32, #tpu.memory_space<vmem>>, vector<1x4xf32>
    %c0_17 = arith.constant 0 : index
    %c0_18 = arith.constant 0 : index
    %18 = vector.load %arg7[%c0_17, %c0_18] : memref<1x4xf32, #tpu.memory_space<vmem>>, vector<1x4xf32>
    %19 = vector.extract_strided_slice %15 {offsets = [0, 0, 0], sizes = [10, 16, 4], strides = [1, 1, 1]} : vector<12x18x4xbf16> to vector<10x16x4xbf16>
    %20 = vector.extract_strided_slice %15 {offsets = [0, 1, 0], sizes = [10, 16, 4], strides = [1, 1, 1]} : vector<12x18x4xbf16> to vector<10x16x4xbf16>
    %21 = vector.extract_strided_slice %15 {offsets = [0, 2, 0], sizes = [10, 16, 4], strides = [1, 1, 1]} : vector<12x18x4xbf16> to vector<10x16x4xbf16>
    %22 = vector.extract_strided_slice %15 {offsets = [1, 0, 0], sizes = [10, 16, 4], strides = [1, 1, 1]} : vector<12x18x4xbf16> to vector<10x16x4xbf16>
    %23 = vector.extract_strided_slice %15 {offsets = [1, 1, 0], sizes = [10, 16, 4], strides = [1, 1, 1]} : vector<12x18x4xbf16> to vector<10x16x4xbf16>
    %24 = vector.extract_strided_slice %15 {offsets = [1, 2, 0], sizes = [10, 16, 4], strides = [1, 1, 1]} : vector<12x18x4xbf16> to vector<10x16x4xbf16>
    %25 = vector.extract_strided_slice %15 {offsets = [2, 0, 0], sizes = [10, 16, 4], strides = [1, 1, 1]} : vector<12x18x4xbf16> to vector<10x16x4xbf16>
    %26 = vector.extract_strided_slice %15 {offsets = [2, 1, 0], sizes = [10, 16, 4], strides = [1, 1, 1]} : vector<12x18x4xbf16> to vector<10x16x4xbf16>
    %27 = vector.extract_strided_slice %15 {offsets = [2, 2, 0], sizes = [10, 16, 4], strides = [1, 1, 1]} : vector<12x18x4xbf16> to vector<10x16x4xbf16>
    %28 = tpu.concatenate %19, %20, %21, %22, %23, %24, %25, %26, %27 in 2 : vector<10x16x4xbf16>, vector<10x16x4xbf16>, vector<10x16x4xbf16>, vector<10x16x4xbf16>, vector<10x16x4xbf16>, vector<10x16x4xbf16>, vector<10x16x4xbf16>, vector<10x16x4xbf16>, vector<10x16x4xbf16> -> vector<10x16x36xbf16>
    %29 = vector.shape_cast %28 : vector<10x16x36xbf16> to vector<160x36xbf16>
    %cst_19 = arith.constant dense<0.000000e+00> : vector<160x4xf32>
    %30 = tpu.matmul %29, %16, %cst_19 {dimension_numbers = #tpu.dot_dimension_numbers<[1], [0], [0], [1], [0, 0, 1, 1], [], []>} : vector<160x36xbf16>, vector<36x4xbf16>, vector<160x4xf32> -> vector<160x4xf32>
    %31 = vector.broadcast %17 : vector<1x4xf32> to vector<160x4xf32>
    %32 = arith.mulf %30, %31 : vector<160x4xf32>
    %33 = vector.broadcast %18 : vector<1x4xf32> to vector<160x4xf32>
    %34 = arith.addf %32, %33 : vector<160x4xf32>
    %cst_20 = arith.constant 0.000000e+00 : f32
    %35 = vector.broadcast %cst_20 : f32 to vector<160x4xf32>
    %36 = arith.maximumf %34, %35 : vector<160x4xf32>
    %37 = vector.shape_cast %36 : vector<160x4xf32> to vector<10x16x4xf32>
    %38 = vector.extract_strided_slice %37 {offsets = [0, 0, 0], sizes = [1, 16, 4], strides = [1, 1, 1]} : vector<10x16x4xf32> to vector<1x16x4xf32>
    %cst_21 = arith.constant 0.000000e+00 : f32
    %39 = vector.broadcast %cst_21 : f32 to vector<1x16x4xf32>
    %40 = arith.select %0, %39, %38 : vector<1x16x4xf32>
    %41 = vector.extract_strided_slice %37 {offsets = [9, 0, 0], sizes = [1, 16, 4], strides = [1, 1, 1]} : vector<10x16x4xf32> to vector<1x16x4xf32>
    %cst_22 = arith.constant 0.000000e+00 : f32
    %42 = vector.broadcast %cst_22 : f32 to vector<1x16x4xf32>
    %43 = arith.select %1, %42, %41 : vector<1x16x4xf32>
    %44 = vector.extract_strided_slice %37 {offsets = [1, 0, 0], sizes = [8, 16, 4], strides = [1, 1, 1]} : vector<10x16x4xf32> to vector<8x16x4xf32>
    %45 = tpu.concatenate %40, %44, %43 in 0 : vector<1x16x4xf32>, vector<8x16x4xf32>, vector<1x16x4xf32> -> vector<10x16x4xf32>
    %46 = arith.truncf %45 : vector<10x16x4xf32> to vector<10x16x4xbf16>
    %cst_23 = arith.constant 0.000000e+00 : bf16
    %47 = vector.broadcast %cst_23 : bf16 to vector<10x1x4xbf16>
    %48 = tpu.concatenate %47, %46, %47 in 1 : vector<10x1x4xbf16>, vector<10x16x4xbf16>, vector<10x1x4xbf16> -> vector<10x18x4xbf16>
    %c0_24 = arith.constant 0 : index
    %c0_25 = arith.constant 0 : index
    %49 = vector.load %arg8[%c0_24, %c0_25] : memref<36x4xbf16, #tpu.memory_space<vmem>>, vector<36x4xbf16>
    %c0_26 = arith.constant 0 : index
    %c0_27 = arith.constant 0 : index
    %50 = vector.load %arg9[%c0_26, %c0_27] : memref<1x4xf32, #tpu.memory_space<vmem>>, vector<1x4xf32>
    %c0_28 = arith.constant 0 : index
    %c0_29 = arith.constant 0 : index
    %51 = vector.load %arg10[%c0_28, %c0_29] : memref<1x4xf32, #tpu.memory_space<vmem>>, vector<1x4xf32>
    %52 = vector.extract_strided_slice %48 {offsets = [0, 0, 0], sizes = [8, 16, 4], strides = [1, 1, 1]} : vector<10x18x4xbf16> to vector<8x16x4xbf16>
    %53 = vector.extract_strided_slice %48 {offsets = [0, 1, 0], sizes = [8, 16, 4], strides = [1, 1, 1]} : vector<10x18x4xbf16> to vector<8x16x4xbf16>
    %54 = vector.extract_strided_slice %48 {offsets = [0, 2, 0], sizes = [8, 16, 4], strides = [1, 1, 1]} : vector<10x18x4xbf16> to vector<8x16x4xbf16>
    %55 = vector.extract_strided_slice %48 {offsets = [1, 0, 0], sizes = [8, 16, 4], strides = [1, 1, 1]} : vector<10x18x4xbf16> to vector<8x16x4xbf16>
    %56 = vector.extract_strided_slice %48 {offsets = [1, 1, 0], sizes = [8, 16, 4], strides = [1, 1, 1]} : vector<10x18x4xbf16> to vector<8x16x4xbf16>
    %57 = vector.extract_strided_slice %48 {offsets = [1, 2, 0], sizes = [8, 16, 4], strides = [1, 1, 1]} : vector<10x18x4xbf16> to vector<8x16x4xbf16>
    %58 = vector.extract_strided_slice %48 {offsets = [2, 0, 0], sizes = [8, 16, 4], strides = [1, 1, 1]} : vector<10x18x4xbf16> to vector<8x16x4xbf16>
    %59 = vector.extract_strided_slice %48 {offsets = [2, 1, 0], sizes = [8, 16, 4], strides = [1, 1, 1]} : vector<10x18x4xbf16> to vector<8x16x4xbf16>
    %60 = vector.extract_strided_slice %48 {offsets = [2, 2, 0], sizes = [8, 16, 4], strides = [1, 1, 1]} : vector<10x18x4xbf16> to vector<8x16x4xbf16>
    %61 = tpu.concatenate %52, %53, %54, %55, %56, %57, %58, %59, %60 in 2 : vector<8x16x4xbf16>, vector<8x16x4xbf16>, vector<8x16x4xbf16>, vector<8x16x4xbf16>, vector<8x16x4xbf16>, vector<8x16x4xbf16>, vector<8x16x4xbf16>, vector<8x16x4xbf16>, vector<8x16x4xbf16> -> vector<8x16x36xbf16>
    %62 = vector.shape_cast %61 : vector<8x16x36xbf16> to vector<128x36xbf16>
    %cst_30 = arith.constant dense<0.000000e+00> : vector<128x4xf32>
    %63 = tpu.matmul %62, %49, %cst_30 {dimension_numbers = #tpu.dot_dimension_numbers<[1], [0], [0], [1], [0, 0, 1, 1], [], []>} : vector<128x36xbf16>, vector<36x4xbf16>, vector<128x4xf32> -> vector<128x4xf32>
    %64 = vector.broadcast %50 : vector<1x4xf32> to vector<128x4xf32>
    %65 = arith.mulf %63, %64 : vector<128x4xf32>
    %66 = vector.broadcast %51 : vector<1x4xf32> to vector<128x4xf32>
    %67 = arith.addf %65, %66 : vector<128x4xf32>
    %cst_31 = arith.constant 0.000000e+00 : f32
    %68 = vector.broadcast %cst_31 : f32 to vector<128x4xf32>
    %69 = arith.maximumf %67, %68 : vector<128x4xf32>
    %70 = vector.shape_cast %69 : vector<128x4xf32> to vector<8x16x4xf32>
    %c0_32 = arith.constant 0 : index
    %c0_33 = arith.constant 0 : index
    %c0_34 = arith.constant 0 : index
    %c0_35 = arith.constant 0 : index
    %71 = vector.load %arg11[%c0_32, %c0_33, %c0_34, %c0_35] : memref<1x8x16x4xf32, #tpu.memory_space<vmem>>, vector<1x8x16x4xf32>
    %72 = vector.shape_cast %71 : vector<1x8x16x4xf32> to vector<8x16x4xf32>
    %73 = vector.shape_cast %70 : vector<8x16x4xf32> to vector<1x8x16x4xf32>
    tpu.vector_store %arg11[%c0_32, %c0_33, %c0_34, %c0_35], %73 {strides = array<i32>} : memref<1x8x16x4xf32, #tpu.memory_space<vmem>>, vector<1x8x16x4xf32>,
    return
  }
  func.func @transform_0(%arg0: i32, %arg1: i32) -> (i32, i32, i32, i32) {
    %c0_i32 = arith.constant 0 : i32
    %c0_i32_0 = arith.constant 0 : i32
    %c0_i32_1 = arith.constant 0 : i32
    return %arg0, %arg1, %c0_i32, %c0_i32_0 : i32, i32, i32, i32
  }
  func.func @transform_1(%arg0: i32, %arg1: i32) -> (i32, i32, i32, i32) {
    %c4_i32 = arith.constant 4 : i32
    %0 = arith.muli %arg1, %c4_i32 : i32
    %c1_i32 = arith.constant 1 : i32
    %1 = arith.subi %0, %c1_i32 : i32
    %c0_i32 = arith.constant 0 : i32
    %2 = arith.maxsi %1, %c0_i32 : i32
    %c0_i32_0 = arith.constant 0 : i32
    %c0_i32_1 = arith.constant 0 : i32
    %c0_i32_2 = arith.constant 0 : i32
    return %arg0, %2, %c0_i32_0, %c0_i32_1 : i32, i32, i32, i32
  }
  func.func @transform_2(%arg0: i32, %arg1: i32) -> (i32, i32, i32, i32) {
    %c1_i32 = arith.constant 1 : i32
    %0 = arith.addi %arg1, %c1_i32 : i32
    %c4_i32 = arith.constant 4 : i32
    %1 = arith.muli %0, %c4_i32 : i32
    %c7_i32 = arith.constant 7 : i32
    %2 = arith.minsi %1, %c7_i32 : i32
    %c0_i32 = arith.constant 0 : i32
    %c0_i32_0 = arith.constant 0 : i32
    %c0_i32_1 = arith.constant 0 : i32
    return %arg0, %2, %c0_i32, %c0_i32_0 : i32, i32, i32, i32
  }
  func.func @transform_3(%arg0: i32, %arg1: i32) -> (i32, i32) {
    %c0_i32 = arith.constant 0 : i32
    %c0_i32_0 = arith.constant 0 : i32
    %c0_i32_1 = arith.constant 0 : i32
    return %c0_i32, %c0_i32_0 : i32, i32
  }
  func.func @transform_4(%arg0: i32, %arg1: i32) -> (i32, i32) {
    %c0_i32 = arith.constant 0 : i32
    %c0_i32_0 = arith.constant 0 : i32
    %c0_i32_1 = arith.constant 0 : i32
    return %c0_i32, %c0_i32_0 : i32, i32
  }
  func.func @transform_5(%arg0: i32, %arg1: i32) -> (i32, i32) {
    %c0_i32 = arith.constant 0 : i32
    %c0_i32_0 = arith.constant 0 : i32
    %c0_i32_1 = arith.constant 0 : i32
    return %c0_i32, %c0_i32_0 : i32, i32
  }
  func.func @transform_6(%arg0: i32, %arg1: i32) -> (i32, i32) {
    %c0_i32 = arith.constant 0 : i32
    %c0_i32_0 = arith.constant 0 : i32
    %c0_i32_1 = arith.constant 0 : i32
    return %c0_i32, %c0_i32_0 : i32, i32
  }
  func.func @transform_7(%arg0: i32, %arg1: i32) -> (i32, i32) {
    %c0_i32 = arith.constant 0 : i32
    %c0_i32_0 = arith.constant 0 : i32
    %c0_i32_1 = arith.constant 0 : i32
    return %c0_i32, %c0_i32_0 : i32, i32
  }
  func.func @transform_8(%arg0: i32, %arg1: i32) -> (i32, i32) {
    %c0_i32 = arith.constant 0 : i32
    %c0_i32_0 = arith.constant 0 : i32
    %c0_i32_1 = arith.constant 0 : i32
    return %c0_i32, %c0_i32_0 : i32, i32
  }
  func.func @transform_9(%arg0: i32, %arg1: i32) -> (i32, i32, i32, i32) {
    %c0_i32 = arith.constant 0 : i32
    %c0_i32_0 = arith.constant 0 : i32
    %c0_i32_1 = arith.constant 0 : i32
    return %arg0, %arg1, %c0_i32, %c0_i32_0 : i32, i32, i32, i32
  }
}

</mosaic_0001>

<llo_original>
// kernel: tpu_custom_call.1
$region0: #{tpu_custom_call.1}
  #allocation0 [shape = 'u32[]', space=smem, size = 0x4, offset = 0x4, fixed_abs, tag = 'smem constant byte address 0x4 - core index']
  #allocation1 [shape = 'u32[144,128]{1,0:T(1,128)}', space=vmem, size = 0x12000, scoped, tag = 'internal scratch']
  %s0 = inlined_call_operand.vmem [shape: f32[2,16,16,4], index: 0, kind: input, shape index: {}]
  %s1 = inlined_call_operand.vmem [shape: f32[2,16,16,4], index: 1, kind: input, shape index: {}]
  %s2 = inlined_call_operand.vmem [shape: f32[2,16,16,4], index: 2, kind: input, shape index: {}]
  %s3 = inlined_call_operand.vmem [shape: bf16[36,4], index: 3, kind: input, shape index: {}]
  %s4 = inlined_call_operand.vmem [shape: f32[1,4], index: 4, kind: input, shape index: {}]
  %s5 = inlined_call_operand.vmem [shape: f32[1,4], index: 5, kind: input, shape index: {}]
  %s6 = inlined_call_operand.vmem [shape: bf16[36,4], index: 6, kind: input, shape index: {}]
  %s7 = inlined_call_operand.vmem [shape: f32[1,4], index: 7, kind: input, shape index: {}]
  %s8 = inlined_call_operand.vmem [shape: f32[1,4], index: 8, kind: input, shape index: {}]
  %s9 = inlined_call_operand.vmem [shape: f32[2,16,16,4], index: 9, kind: output, shape index: {}]
  %s10 = sld [smem:[#allocation0]]
  $region69: #{tpu_custom_call.1} parent=0
    _
  %s12 = ssub.s32 1, %s10
  %s13 = scalar_select 0, %s12, %s10
  loop: start=0, step=1, limit=6
  $region2: #{tpu_custom_call.1} parent=0 // loop_pre_header
    _
  $region3: #{tpu_custom_call.1} parent=0 // loop_header
    %s15 = sphi 0, %s19
    %p16 = scmp.ge.s32.totalorder %s15, 6
    %s22 = sphi 0, %s34
    %s23 = sphi 0, %s30
    %s24 = sphi 0, %s22
    %s25 = sphi 0, %s23
    %s26 = sphi 0, %s24
    %s27 = sphi 0, %s25
    %s39 = sphi 0, %s41
    %s42 = sphi 0, %s39
    %s43 = sphi 0, %s42
    %s59 = sphi 0, %s43
    %s75 = sphi 0, %s77
    %s78 = sphi 0, %s75
    %s79 = sphi 0, %s78
    %s95 = sphi 0, %s79
    %s111 = sphi 0, %s113
    %s114 = sphi 0, %s111
    %s115 = sphi 0, %s114
    %s131 = sphi 0, %s115
    %s135 = sphi 0, %s135
    %s137 = sphi 0, %s135
    %s138 = sphi 0, %s137
    %s152 = sphi 0, %s138
    %s156 = sphi 0, %s156
    %s158 = sphi 0, %s156
    %s159 = sphi 0, %s158
    %s173 = sphi 0, %s159
    %s177 = sphi 0, %s177
    %s179 = sphi 0, %s177
    %s180 = sphi 0, %s179
    %s194 = sphi 0, %s180
    %s198 = sphi 0, %s198
    %s200 = sphi 0, %s198
    %s201 = sphi 0, %s200
    %s215 = sphi 0, %s201
    %s219 = sphi 0, %s219
    %s221 = sphi 0, %s219
    %s222 = sphi 0, %s221
    %s236 = sphi 0, %s222
    %s240 = sphi 0, %s240
    %s242 = sphi 0, %s240
    %s243 = sphi 0, %s242
    %s257 = sphi 0, %s243
    %s265 = sphi 0, %s267
    %s268 = sphi 0, %s265
    %s269 = sphi 0, %s268
    %s285 = sphi 0, %s269
  $region4: #{tpu_custom_call.1} parent=0 // loop_header_branch
    %18 = sbr.rel (%p16) target = $region8
  $region5: #{tpu_custom_call.1} parent=0 // loop_body
    %s20 = ssub.s32 %s15, 1
    %s21 = ssub.s32 %s15, 2
    %s28 = sadd.s32 1, %s23
    %p29 = scmp.ge.s32.totalorder %s28, 2
    %s30 = scalar_select %p29, 0, %s28
    %s31 = sadd.s32 1, %s22
    %s32 = scalar_select %p29, %s31, %s22
    %p33 = scmp.ge.s32.totalorder %s32, 2
    %s34 = scalar_select %p33, 0, %s32
    %s35 = ssub.s32 %s22, %s34
    %s36 = ssub.s32 %s23, %s30
    %s37 = sor.u32 %s35, %s36
    %p38 = scmp.eq.s32.totalorder %s37, 0
    %s40 = sadd.s32 %s39, 1
    %s41 = scalar_select %p38, %s39, %s40
    %p44 = pneg %p38
    %p45 = scmp.eq.s32.totalorder %s15, 3
    %p46 = por %p44, %p45
    %p47 = scmp.ne.s32.totalorder %s39, %s42
    %p48 = scmp.eq.s32.totalorder %s15, 0
    %p49 = por %p47, %p48
    %p50 = scmp.ne.s32.totalorder %s39, %s42
    %p51 = scmp.eq.s32.totalorder %s20, 3
    %p52 = por %p50, %p51
    %p53 = scmp.ne.s32.totalorder %s42, %s43
    %p54 = scmp.eq.s32.totalorder %s20, 0
    %p55 = por %p53, %p54
    %p56 = scmp.ne.s32.totalorder %s42, %s43
    %p57 = scmp.eq.s32.totalorder %s21, 3
    %p58 = por %p56, %p57
    %p60 = scmp.ne.s32.totalorder %s43, %s59
    %p61 = scmp.eq.s32.totalorder %s21, 0
    %p62 = por %p60, %p61
    %s63 = smul.u32 %s23, 4
    %s64 = ssub.s32 %s63, 1
    %p65 = scmp.gt.s32.totalorder %s64, 0
    %s66 = scalar_select %p65, %s64, 0
    %s67 = smul.u32 %s30, 4
    %s68 = ssub.s32 %s67, 1
    %p69 = scmp.gt.s32.totalorder %s68, 0
    %s70 = scalar_select %p69, %s68, 0
    %s71 = ssub.s32 %s22, %s34
    %s72 = ssub.s32 %s66, %s70
    %s73 = sor.u32 %s71, %s72
    %p74 = scmp.eq.s32.totalorder %s73, 0
    %s76 = sadd.s32 %s75, 1
    %s77 = scalar_select %p74, %s75, %s76
    %p80 = pneg %p74
    %p81 = scmp.eq.s32.totalorder %s15, 3
    %p82 = por %p80, %p81
    %p83 = scmp.ne.s32.totalorder %s75, %s78
    %p84 = scmp.eq.s32.totalorder %s15, 0
    %p85 = por %p83, %p84
    %p86 = scmp.ne.s32.totalorder %s75, %s78
    %p87 = scmp.eq.s32.totalorder %s20, 3
    %p88 = por %p86, %p87
    %p89 = scmp.ne.s32.totalorder %s78, %s79
    %p90 = scmp.eq.s32.totalorder %s20, 0
    %p91 = por %p89, %p90
    %p92 = scmp.ne.s32.totalorder %s78, %s79
    %p93 = scmp.eq.s32.totalorder %s21, 3
    %p94 = por %p92, %p93
    %p96 = scmp.ne.s32.totalorder %s79, %s95
    %p97 = scmp.eq.s32.totalorder %s21, 0
    %p98 = por %p96, %p97
    %s99 = sadd.s32 %s23, 1
    %s100 = smul.u32 %s99, 4
    %p101 = scmp.lt.s32.totalorder %s100, 7
    %s102 = scalar_select %p101, %s100, 7
    %s103 = sadd.s32 %s30, 1
    %s104 = smul.u32 %s103, 4
    %p105 = scmp.lt.s32.totalorder %s104, 7
    %s106 = scalar_select %p105, %s104, 7
    %s107 = ssub.s32 %s22, %s34
    %s108 = ssub.s32 %s102, %s106
    %s109 = sor.u32 %s107, %s108
    %p110 = scmp.eq.s32.totalorder %s109, 0
    %s112 = sadd.s32 %s111, 1
    %s113 = scalar_select %p110, %s111, %s112
    %p116 = pneg %p110
    %p117 = scmp.eq.s32.totalorder %s15, 3
    %p118 = por %p116, %p117
    %p119 = scmp.ne.s32.totalorder %s111, %s114
    %p120 = scmp.eq.s32.totalorder %s15, 0
    %p121 = por %p119, %p120
    %p122 = scmp.ne.s32.totalorder %s111, %s114
    %p123 = scmp.eq.s32.totalorder %s20, 3
    %p124 = por %p122, %p123
    %p125 = scmp.ne.s32.totalorder %s114, %s115
    %p126 = scmp.eq.s32.totalorder %s20, 0
    %p127 = por %p125, %p126
    %p128 = scmp.ne.s32.totalorder %s114, %s115
    %p129 = scmp.eq.s32.totalorder %s21, 3
    %p130 = por %p128, %p129
    %p132 = scmp.ne.s32.totalorder %s115, %s131
    %p133 = scmp.eq.s32.totalorder %s21, 0
    %p134 = por %p132, %p133
    %s136 = sadd.s32 %s135, 1
    %p139 = scmp.eq.s32.totalorder %s15, 3
    %p140 = scmp.ne.s32.totalorder %s135, %s137
    %p141 = scmp.eq.s32.totalorder %s15, 0
    %p142 = por %p140, %p141
    %p143 = scmp.ne.s32.totalorder %s135, %s137
    %p144 = scmp.eq.s32.totalorder %s20, 3
    %p145 = por %p143, %p144
    %p146 = scmp.ne.s32.totalorder %s137, %s138
    %p147 = scmp.eq.s32.totalorder %s20, 0
    %p148 = por %p146, %p147
    %p149 = scmp.ne.s32.totalorder %s137, %s138
    %p150 = scmp.eq.s32.totalorder %s21, 3
    %p151 = por %p149, %p150
    %p153 = scmp.ne.s32.totalorder %s138, %s152
    %p154 = scmp.eq.s32.totalorder %s21, 0
    %p155 = por %p153, %p154
    %s157 = sadd.s32 %s156, 1
    %p160 = scmp.eq.s32.totalorder %s15, 3
    %p161 = scmp.ne.s32.totalorder %s156, %s158
    %p162 = scmp.eq.s32.totalorder %s15, 0
    %p163 = por %p161, %p162
    %p164 = scmp.ne.s32.totalorder %s156, %s158
    %p165 = scmp.eq.s32.totalorder %s20, 3
    %p166 = por %p164, %p165
    %p167 = scmp.ne.s32.totalorder %s158, %s159
    %p168 = scmp.eq.s32.totalorder %s20, 0
    %p169 = por %p167, %p168
    %p170 = scmp.ne.s32.totalorder %s158, %s159
    %p171 = scmp.eq.s32.totalorder %s21, 3
    %p172 = por %p170, %p171
    %p174 = scmp.ne.s32.totalorder %s159, %s173
    %p175 = scmp.eq.s32.totalorder %s21, 0
    %p176 = por %p174, %p175
    %s178 = sadd.s32 %s177, 1
    %p181 = scmp.eq.s32.totalorder %s15, 3
    %p182 = scmp.ne.s32.totalorder %s177, %s179
    %p183 = scmp.eq.s32.totalorder %s15, 0
    %p184 = por %p182, %p183
    %p185 = scmp.ne.s32.totalorder %s177, %s179
    %p186 = scmp.eq.s32.totalorder %s20, 3
    %p187 = por %p185, %p186
    %p188 = scmp.ne.s32.totalorder %s179, %s180
    %p189 = scmp.eq.s32.totalorder %s20, 0
    %p190 = por %p188, %p189
    %p191 = scmp.ne.s32.totalorder %s179, %s180
    %p192 = scmp.eq.s32.totalorder %s21, 3
    %p193 = por %p191, %p192
    %p195 = scmp.ne.s32.totalorder %s180, %s194
    %p196 = scmp.eq.s32.totalorder %s21, 0
    %p197 = por %p195, %p196
    %s199 = sadd.s32 %s198, 1
    %p202 = scmp.eq.s32.totalorder %s15, 3
    %p203 = scmp.ne.s32.totalorder %s198, %s200
    %p204 = scmp.eq.s32.totalorder %s15, 0
    %p205 = por %p203, %p204
    %p206 = scmp.ne.s32.totalorder %s198, %s200
    %p207 = scmp.eq.s32.totalorder %s20, 3
    %p208 = por %p206, %p207
    %p209 = scmp.ne.s32.totalorder %s200, %s201
    %p210 = scmp.eq.s32.totalorder %s20, 0
    %p211 = por %p209, %p210
    %p212 = scmp.ne.s32.totalorder %s200, %s201
    %p213 = scmp.eq.s32.totalorder %s21, 3
    %p214 = por %p212, %p213
    %p216 = scmp.ne.s32.totalorder %s201, %s215
    %p217 = scmp.eq.s32.totalorder %s21, 0
    %p218 = por %p216, %p217
    %s220 = sadd.s32 %s219, 1
    %p223 = scmp.eq.s32.totalorder %s15, 3
    %p224 = scmp.ne.s32.totalorder %s219, %s221
    %p225 = scmp.eq.s32.totalorder %s15, 0
    %p226 = por %p224, %p225
    %p227 = scmp.ne.s32.totalorder %s219, %s221
    %p228 = scmp.eq.s32.totalorder %s20, 3
    %p229 = por %p227, %p228
    %p230 = scmp.ne.s32.totalorder %s221, %s222
    %p231 = scmp.eq.s32.totalorder %s20, 0
    %p232 = por %p230, %p231
    %p233 = scmp.ne.s32.totalorder %s221, %s222
    %p234 = scmp.eq.s32.totalorder %s21, 3
    %p235 = por %p233, %p234
    %p237 = scmp.ne.s32.totalorder %s222, %s236
    %p238 = scmp.eq.s32.totalorder %s21, 0
    %p239 = por %p237, %p238
    %s241 = sadd.s32 %s240, 1
    %p244 = scmp.eq.s32.totalorder %s15, 3
    %p245 = scmp.ne.s32.totalorder %s240, %s242
    %p246 = scmp.eq.s32.totalorder %s15, 0
    %p247 = por %p245, %p246
    %p248 = scmp.ne.s32.totalorder %s240, %s242
    %p249 = scmp.eq.s32.totalorder %s20, 3
    %p250 = por %p248, %p249
    %p251 = scmp.ne.s32.totalorder %s242, %s243
    %p252 = scmp.eq.s32.totalorder %s20, 0
    %p253 = por %p251, %p252
    %p254 = scmp.ne.s32.totalorder %s242, %s243
    %p255 = scmp.eq.s32.totalorder %s21, 3
    %p256 = por %p254, %p255
    %p258 = scmp.ne.s32.totalorder %s243, %s257
    %p259 = scmp.eq.s32.totalorder %s21, 0
    %p260 = por %p258, %p259
    %s261 = ssub.s32 %s22, %s34
    %s262 = ssub.s32 %s23, %s30
    %s263 = sor.u32 %s261, %s262
    %p264 = scmp.eq.s32.totalorder %s263, 0
    %s266 = sadd.s32 %s265, 1
    %s267 = scalar_select %p264, %s265, %s266
    %p270 = pneg %p264
    %p271 = scmp.eq.s32.totalorder %s15, 3
    %p272 = por %p270, %p271
    %p273 = scmp.ne.s32.totalorder %s265, %s268
    %p274 = scmp.eq.s32.totalorder %s15, 0
    %p275 = por %p273, %p274
    %p276 = scmp.ne.s32.totalorder %s265, %s268
    %p277 = scmp.eq.s32.totalorder %s20, 3
    %p278 = por %p276, %p277
    %p279 = scmp.ne.s32.totalorder %s268, %s269
    %p280 = scmp.eq.s32.totalorder %s20, 0
    %p281 = por %p279, %p280
    %p282 = scmp.ne.s32.totalorder %s268, %s269
    %p283 = scmp.eq.s32.totalorder %s21, 3
    %p284 = por %p282, %p283
    %p286 = scmp.ne.s32.totalorder %s269, %s285
    %p287 = scmp.eq.s32.totalorder %s21, 0
    %p288 = por %p286, %p287
    %p289 = scmp.le.s32.totalorder 1, %s15
    %p290 = scmp.lt.s32.totalorder %s15, 5
    %p291 = pnand %p289, %p290
    %p292 = pneg %p291
    // Predicated region
    $region9: #{tpu_custom_call.1} parent=5 // pred_check
      _
    $region10: #{tpu_custom_call.1} parent=5 // pred_check_branch
      %294 = sbr.rel (%p291) target = $region12
    $region11: #{tpu_custom_call.1} parent=5 // pred_region
      %s295 = ssub.s32 %s15, 1
      // Predicated region
      $region13: #{tpu_custom_call.1} parent=11 // pred_check
        %p296 = pneg %p148
      $region14: #{tpu_custom_call.1} parent=11 // pred_check_branch
        %298 = sbr.rel (%p296) target = $region16
      $region15: #{tpu_custom_call.1} parent=11 // pred_region
        _
      $region16: #{tpu_custom_call.1} parent=11 // pred_fallthru
        _
      // Predicated region
      $region17: #{tpu_custom_call.1} parent=11 // pred_check
        %p299 = pneg %p169
      $region18: #{tpu_custom_call.1} parent=11 // pred_check_branch
        %301 = sbr.rel (%p299) target = $region20
      $region19: #{tpu_custom_call.1} parent=11 // pred_region
        _
      $region20: #{tpu_custom_call.1} parent=11 // pred_fallthru
        _
      // Predicated region
      $region21: #{tpu_custom_call.1} parent=11 // pred_check
        %p302 = pneg %p190
      $region22: #{tpu_custom_call.1} parent=11 // pred_check_branch
        %304 = sbr.rel (%p302) target = $region24
      $region23: #{tpu_custom_call.1} parent=11 // pred_region
        _
      $region24: #{tpu_custom_call.1} parent=11 // pred_fallthru
        _
      // Predicated region
      $region25: #{tpu_custom_call.1} parent=11 // pred_check
        %p305 = pneg %p211
      $region26: #{tpu_custom_call.1} parent=11 // pred_check_branch
        %307 = sbr.rel (%p305) target = $region28
      $region27: #{tpu_custom_call.1} parent=11 // pred_region
        _
      $region28: #{tpu_custom_call.1} parent=11 // pred_fallthru
        _
      // Predicated region
      $region29: #{tpu_custom_call.1} parent=11 // pred_check
        %p308 = pneg %p232
      $region30: #{tpu_custom_call.1} parent=11 // pred_check_branch
        %310 = sbr.rel (%p308) target = $region32
      $region31: #{tpu_custom_call.1} parent=11 // pred_region
        _
      $region32: #{tpu_custom_call.1} parent=11 // pred_fallthru
        _
      // Predicated region
      $region33: #{tpu_custom_call.1} parent=11 // pred_check
        %p311 = pneg %p253
      $region34: #{tpu_custom_call.1} parent=11 // pred_check_branch
        %313 = sbr.rel (%p311) target = $region36
      $region35: #{tpu_custom_call.1} parent=11 // pred_region
        _
      $region36: #{tpu_custom_call.1} parent=11 // pred_fallthru
        _
    $region12: #{tpu_custom_call.1} parent=5 // pred_fallthru
      _
    %p314 = scmp.lt.s32.totalorder %s15, 4
    // Predicated region
    $region37: #{tpu_custom_call.1} parent=5 // pred_check
      %p315 = pneg %p314
    $region38: #{tpu_custom_call.1} parent=5 // pred_check_branch
      %317 = sbr.rel (%p315) target = $region40
    $region39: #{tpu_custom_call.1} parent=5 // pred_region
      // Predicated region
      $region41: #{tpu_custom_call.1} parent=39 // pred_check
        %p318 = pneg %p49
      $region42: #{tpu_custom_call.1} parent=39 // pred_check_branch
        %320 = sbr.rel (%p318) target = $region44
      $region43: #{tpu_custom_call.1} parent=39 // pred_region
        %s321 = smul.u32 8, %s23
        %p322 = scmp.lt.s32.totalorder %s22, 1
        %s323 = scalar_select %p322, %s22, 1
        %p324 = scmp.lt.s32.totalorder %s321, 15
        %s325 = scalar_select %p324, %s321, 15
        %s326 = smul.addr %s325, 2
        %s327 = smul.addr %s323, 32
        %s328 = sadd.s32 %s326, %s327
        %s329 = smul.addr %s328, 8
        %s330 = scalar_lea.vmem %s0, %s329
        %s331 = smul.u32 8, %s23
      $region44: #{tpu_custom_call.1} parent=39 // pred_fallthru
        _
      // Predicated region
      $region45: #{tpu_custom_call.1} parent=39 // pred_check
        %p332 = pneg %p85
      $region46: #{tpu_custom_call.1} parent=39 // pred_check_branch
        %334 = sbr.rel (%p332) target = $region48
      $region47: #{tpu_custom_call.1} parent=39 // pred_region
        %s335 = smul.u32 %s23, 4
        %s336 = ssub.s32 %s335, 1
        %p337 = scmp.gt.s32.totalorder %s336, 0
        %s338 = scalar_select %p337, %s336, 0
        %s339 = smul.u32 2, %s338
        %p340 = scmp.lt.s32.totalorder %s22, 1
        %s341 = scalar_select %p340, %s22, 1
        %p342 = scmp.lt.s32.totalorder %s339, 15
        %s343 = scalar_select %p342, %s339, 15
        %s344 = smul.addr %s343, 2
        %s345 = smul.addr %s341, 32
        %s346 = sadd.s32 %s344, %s345
        %s347 = smul.addr %s346, 8
        %s348 = scalar_lea.vmem %s1, %s347
        %s349 = smul.u32 %s23, 4
        %s350 = ssub.s32 %s349, 1
        %p351 = scmp.gt.s32.totalorder %s350, 0
        %s352 = scalar_select %p351, %s350, 0
        %s353 = smul.u32 2, %s352
      $region48: #{tpu_custom_call.1} parent=39 // pred_fallthru
        _
      // Predicated region
      $region49: #{tpu_custom_call.1} parent=39 // pred_check
        %p354 = pneg %p121
      $region50: #{tpu_custom_call.1} parent=39 // pred_check_branch
        %356 = sbr.rel (%p354) target = $region52
      $region51: #{tpu_custom_call.1} parent=39 // pred_region
        %s357 = sadd.s32 %s23, 1
        %s358 = smul.u32 %s357, 4
        %p359 = scmp.lt.s32.totalorder %s358, 7
        %s360 = scalar_select %p359, %s358, 7
        %s361 = smul.u32 2, %s360
        %p362 = scmp.lt.s32.totalorder %s22, 1
        %s363 = scalar_select %p362, %s22, 1
        %p364 = scmp.lt.s32.totalorder %s361, 15
        %s365 = scalar_select %p364, %s361, 15
        %s366 = smul.addr %s365, 2
        %s367 = smul.addr %s363, 32
        %s368 = sadd.s32 %s366, %s367
        %s369 = smul.addr %s368, 8
        %s370 = scalar_lea.vmem %s2, %s369
        %s371 = sadd.s32 %s23, 1
        %s372 = smul.u32 %s371, 4
        %p373 = scmp.lt.s32.totalorder %s372, 7
        %s374 = scalar_select %p373, %s372, 7
        %s375 = smul.u32 2, %s374
      $region52: #{tpu_custom_call.1} parent=39 // pred_fallthru
        _
    $region40: #{tpu_custom_call.1} parent=5 // pred_fallthru
      _
    %p376 = scmp.le.s32.totalorder 1, %s15
    %p377 = scmp.lt.s32.totalorder %s15, 5
    %p378 = pnand %p376, %p377
    %p379 = pneg %p378
    // Predicated region
    $region53: #{tpu_custom_call.1} parent=5 // pred_check
      _
    $region54: #{tpu_custom_call.1} parent=5 // pred_check_branch
      %381 = sbr.rel (%p378) target = $region56
    $region55: #{tpu_custom_call.1} parent=5 // pred_region
      %s382 = ssub.s32 %s15, 1
      %s383 = smul.u32 8, %s25
      %p384 = scmp.lt.s32.totalorder %s24, 1
      %s385 = scalar_select %p384, %s24, 1
      %p386 = scmp.lt.s32.totalorder %s383, 15
      %s387 = scalar_select %p386, %s383, 15
      %s388 = smul.addr %s387, 2
      %s389 = smul.addr %s385, 32
      %s390 = sadd.s32 %s388, %s389
      %s391 = smul.addr %s390, 8
      %s392 = scalar_lea.vmem %s0, %s391
      %p393 = pneg %p55
      %p394 = pneg %p52
      %s395 = smul.u32 %s25, 4
      %s396 = ssub.s32 %s395, 1
      %p397 = scmp.gt.s32.totalorder %s396, 0
      %s398 = scalar_select %p397, %s396, 0
      %s399 = smul.u32 2, %s398
      %p400 = scmp.lt.s32.totalorder %s24, 1
      %s401 = scalar_select %p400, %s24, 1
      %p402 = scmp.lt.s32.totalorder %s399, 15
      %s403 = scalar_select %p402, %s399, 15
      %s404 = smul.addr %s403, 2
      %s405 = smul.addr %s401, 32
      %s406 = sadd.s32 %s404, %s405
      %s407 = smul.addr %s406, 8
      %s408 = scalar_lea.vmem %s1, %s407
      %p409 = pneg %p91
      %p410 = pneg %p88
      %s411 = sadd.s32 %s25, 1
      %s412 = smul.u32 %s411, 4
      %p413 = scmp.lt.s32.totalorder %s412, 7
      %s414 = scalar_select %p413, %s412, 7
      %s415 = smul.u32 2, %s414
      %p416 = scmp.lt.s32.totalorder %s24, 1
      %s417 = scalar_select %p416, %s24, 1
      %p418 = scmp.lt.s32.totalorder %s415, 15
      %s419 = scalar_select %p418, %s415, 15
      %s420 = smul.addr %s419, 2
      %s421 = smul.addr %s417, 32
      %s422 = sadd.s32 %s420, %s421
      %s423 = smul.addr %s422, 8
      %s424 = scalar_lea.vmem %s2, %s423
      %p425 = pneg %p127
      %p426 = pneg %p124
      %p427 = pneg %p148
      %p428 = pneg %p145
      %p429 = pneg %p169
      %p430 = pneg %p166
      %p431 = pneg %p190
      %p432 = pneg %p187
      %p433 = pneg %p211
      %p434 = pneg %p208
      %p435 = pneg %p232
      %p436 = pneg %p229
      %p437 = pneg %p253
      %p438 = pneg %p250
      %p439 = pneg %p281
      %p440 = pneg %p278
      %s441 = smul.u32 8, %s25
      %p442 = scmp.lt.s32.totalorder %s24, 1
      %s443 = scalar_select %p442, %s24, 1
      %p444 = scmp.lt.s32.totalorder %s441, 15
      %s445 = scalar_select %p444, %s441, 15
      %s446 = smul.addr %s445, 2
      %s447 = smul.addr %s443, 32
      %s448 = sadd.s32 %s446, %s447
      %s449 = smul.addr %s448, 8
      %s450 = scalar_lea.vmem %s9, %s449
      %s451 = smul.u32 8, %s25
      %p452 = scmp.lt.s32.totalorder %s24, 1
      %s453 = scalar_select %p452, %s24, 1
      %p454 = scmp.lt.s32.totalorder %s451, 15
      %s455 = scalar_select %p454, %s451, 15
      %s456 = smul.addr %s455, 2
      %s457 = smul.addr %s453, 32
      %s458 = sadd.s32 %s456, %s457
      %s459 = smul.addr %s458, 8
      %s460 = scalar_lea.vmem %s0, %s459
      %s461 = smul.u32 8, %s25
      %s462 = smul.u32 %s25, 4
      %s463 = ssub.s32 %s462, 1
      %p464 = scmp.gt.s32.totalorder %s463, 0
      %s465 = scalar_select %p464, %s463, 0
      %s466 = smul.u32 2, %s465
      %p467 = scmp.lt.s32.totalorder %s24, 1
      %s468 = scalar_select %p467, %s24, 1
      %p469 = scmp.lt.s32.totalorder %s466, 15
      %s470 = scalar_select %p469, %s466, 15
      %s471 = smul.addr %s470, 2
      %s472 = smul.addr %s468, 32
      %s473 = sadd.s32 %s471, %s472
      %s474 = smul.addr %s473, 8
      %s475 = scalar_lea.vmem %s1, %s474
      %s476 = smul.u32 %s25, 4
      %s477 = ssub.s32 %s476, 1
      %p478 = scmp.gt.s32.totalorder %s477, 0
      %s479 = scalar_select %p478, %s477, 0
      %s480 = smul.u32 2, %s479
      %s481 = sadd.s32 %s25, 1
      %s482 = smul.u32 %s481, 4
      %p483 = scmp.lt.s32.totalorder %s482, 7
      %s484 = scalar_select %p483, %s482, 7
      %s485 = smul.u32 2, %s484
      %p486 = scmp.lt.s32.totalorder %s24, 1
      %s487 = scalar_select %p486, %s24, 1
      %p488 = scmp.lt.s32.totalorder %s485, 15
      %s489 = scalar_select %p488, %s485, 15
      %s490 = smul.addr %s489, 2
      %s491 = smul.addr %s487, 32
      %s492 = sadd.s32 %s490, %s491
      %s493 = smul.addr %s492, 8
      %s494 = scalar_lea.vmem %s2, %s493
      %s495 = sadd.s32 %s25, 1
      %s496 = smul.u32 %s495, 4
      %p497 = scmp.lt.s32.totalorder %s496, 7
      %s498 = scalar_select %p497, %s496, 7
      %s499 = smul.u32 2, %s498
      %s500 = smul.u32 8, %s25
      %p501 = scmp.lt.s32.totalorder %s24, 1
      %s502 = scalar_select %p501, %s24, 1
      %p503 = scmp.lt.s32.totalorder %s500, 15
      %s504 = scalar_select %p503, %s500, 15
      %s505 = smul.addr %s504, 2
      %s506 = smul.addr %s502, 32
      %s507 = sadd.s32 %s505, %s506
      %s508 = smul.addr %s507, 8
      %s509 = scalar_lea.vmem %s9, %s508
      %s510 = smul.u32 8, %s25
      %p512 = scmp.eq.s32.totalorder %s25, 0
      %p513 = scmp.eq.s32.totalorder %s25, 1
      %v514 = vld [vmem:[%s475] sm:$0xff]
      %v515 = vld [vmem:[%s475 + $0x8] sm:$0xff]
      %v516 = vld [vmem:[%s475 + $0x10] sm:$0xff]
      %v517 = vld [vmem:[%s475 + $0x18] sm:$0xff]
      %s518 = scalar_select %p512, 1, 0
      %v519 = vstv %s518
      %vm520 = vcmp.eq.s32.totalorder %v519, 1
      %v521 = vsel %vm520, 0.0, %v514
      %v522 = vsel %vm520, 0.0, %v515
      %v523 = vsel %vm520, 0.0, %v516
      %v524 = vsel %vm520, 0.0, %v517
      %v525 = vld [vmem:[%s494] sm:$0xff]
      %v526 = vld [vmem:[%s494 + $0x8] sm:$0xff]
      %v527 = vld [vmem:[%s494 + $0x10] sm:$0xff]
      %v528 = vld [vmem:[%s494 + $0x18] sm:$0xff]
      %s529 = scalar_select %p513, 1, 0
      %v530 = vstv %s529
      %vm531 = vcmp.eq.s32.totalorder %v530, 1
      %v532 = vsel %vm531, 0.0, %v525
      %v533 = vsel %vm531, 0.0, %v526
      %v534 = vsel %vm531, 0.0, %v527
      %v535 = vsel %vm531, 0.0, %v528
      %v536 = vld [vmem:[%s460] sm:$0xff]
      %v537 = vld [vmem:[%s460 + $0x8] sm:$0xff]
      %v538 = vld [vmem:[%s460 + $0x10] sm:$0xff]
      %v539 = vld [vmem:[%s460 + $0x18] sm:$0xff]
      %v540 = vld [vmem:[%s460 + $0x20] sm:$0xff]
      %v541 = vld [vmem:[%s460 + $0x28] sm:$0xff]
      %v542 = vld [vmem:[%s460 + $0x30] sm:$0xff]
      %v543 = vld [vmem:[%s460 + $0x38] sm:$0xff]
      %v544 = vld [vmem:[%s460 + $0x40] sm:$0xff]
      %v545 = vld [vmem:[%s460 + $0x48] sm:$0xff]
      %v546 = vld [vmem:[%s460 + $0x50] sm:$0xff]
      %v547 = vld [vmem:[%s460 + $0x58] sm:$0xff]
      %v548 = vld [vmem:[%s460 + $0x60] sm:$0xff]
      %v549 = vld [vmem:[%s460 + $0x68] sm:$0xff]
      %v550 = vld [vmem:[%s460 + $0x70] sm:$0xff]
      %v551 = vld [vmem:[%s460 + $0x78] sm:$0xff]
      %v552 = vpack.c.bf16 %v522, %v521
      %v553 = vpack.c.bf16 %v524, %v523
      %v554 = vpack.c.bf16 %v537, %v536
      %v555 = vpack.c.bf16 %v539, %v538
      %v556 = vpack.c.bf16 %v541, %v540
      %v557 = vpack.c.bf16 %v543, %v542
      %v558 = vpack.c.bf16 %v545, %v544
      %v559 = vpack.c.bf16 %v547, %v546
      %v560 = vpack.c.bf16 %v549, %v548
      %v561 = vpack.c.bf16 %v551, %v550
      %v562 = vpack.c.bf16 %v533, %v532
      %v563 = vpack.c.bf16 %v535, %v534
      %v565 = vshrl.u32 %v552, 16
      %v567 = vrot.slane %v565, 7
      %v568 = vshll.u32 %v552, 16
      %v570 = vor.u32 %v567, %v568
      %v572 = vshrl.u32 %v553, 16
      %v574 = vrot.slane %v572, 7
      %v575 = vshll.u32 %v553, 16
      %v577 = vor.u32 %v574, %v575
      %v579 = vshrl.u32 %v554, 16
      %v581 = vrot.slane %v579, 7
      %v582 = vshll.u32 %v554, 16
      %v584 = vor.u32 %v581, %v582
      %v586 = vshrl.u32 %v555, 16
      %v588 = vrot.slane %v586, 7
      %v589 = vshll.u32 %v555, 16
      %v591 = vor.u32 %v588, %v589
      %v593 = vshrl.u32 %v556, 16
      %v595 = vrot.slane %v593, 7
      %v596 = vshll.u32 %v556, 16
      %v598 = vor.u32 %v595, %v596
      %v600 = vshrl.u32 %v557, 16
      %v602 = vrot.slane %v600, 7
      %v603 = vshll.u32 %v557, 16
      %v605 = vor.u32 %v602, %v603
      %v607 = vshrl.u32 %v558, 16
      %v609 = vrot.slane %v607, 7
      %v610 = vshll.u32 %v558, 16
      %v612 = vor.u32 %v609, %v610
      %v614 = vshrl.u32 %v559, 16
      %v616 = vrot.slane %v614, 7
      %v617 = vshll.u32 %v559, 16
      %v619 = vor.u32 %v616, %v617
      %v621 = vshrl.u32 %v560, 16
      %v623 = vrot.slane %v621, 7
      %v624 = vshll.u32 %v560, 16
      %v626 = vor.u32 %v623, %v624
      %v628 = vshrl.u32 %v561, 16
      %v630 = vrot.slane %v628, 7
      %v631 = vshll.u32 %v561, 16
      %v633 = vor.u32 %v630, %v631
      %v635 = vshrl.u32 %v562, 16
      %v637 = vrot.slane %v635, 7
      %v638 = vshll.u32 %v562, 16
      %v640 = vor.u32 %v637, %v638
      %v642 = vshrl.u32 %v563, 16
      %v644 = vrot.slane %v642, 7
      %v645 = vshll.u32 %v563, 16
      %v647 = vor.u32 %v644, %v645
      %vm672 = vcmask 1040384
      %vm673 = vsmask.f32 256
      %vm674 = vmand %vm672, %vm673
      %v675 = vsel %vm674, 0, %v570
      %v676 = vsel %vm674, 0, %v577
      %v677 = vsel %vm674, 0, %v584
      %v678 = vsel %vm674, 0, %v591
      %v679 = vsel %vm674, 0, %v598
      %v680 = vsel %vm674, 0, %v605
      %v681 = vsel %vm674, 0, %v612
      %v682 = vsel %vm674, 0, %v619
      %v683 = vsel %vm674, 0, %v626
      %v684 = vsel %vm674, 0, %v633
      %v685 = vsel %vm674, 0, %v640
      %v686 = vsel %vm674, 0, %v647
      %v687 = vsel %vm674, %v567, 0
      %v688 = vsel %vm674, %v574, 0
      %v689 = vsel %vm674, %v581, 0
      %v690 = vsel %vm674, %v588, 0
      %v691 = vsel %vm674, %v595, 0
      %v692 = vsel %vm674, %v602, 0
      %v693 = vsel %vm674, %v609, 0
      %v694 = vsel %vm674, %v616, 0
      %v695 = vsel %vm674, %v623, 0
      %v696 = vsel %vm674, %v630, 0
      %v697 = vsel %vm674, %v637, 0
      %v698 = vsel %vm674, %v644, 0
      %v699 = vld [vmem:[%s3] sm:$0xf]
      %v700 = vld [vmem:[%s3 + $0x4] sm:$0xf]
      %v701 = vld [vmem:[%s3 + $0x8] sm:$0xf]
      %v702 = vld [vmem:[%s3 + $0xc] sm:$0xf]
      %v703 = vld [vmem:[%s3 + $0x10] sm:$0x3]
      %v704 = vld [vmem:[%s4] sm:$0x1]
      %v705 = vld [vmem:[%s5] sm:$0x1]
      %vm706 = vsmask.f32 7424
      %v708 = vshrl.u32 %v675, 16
      %v710 = vshll.u32 %v675, 16
      %v712 = vrot.slane %v710, 1
      %v713 = vor.u32 %v708, %v712
      %v715 = vshll.u32 %v687, 16
      %v717 = vrot.slane %v715, 1
      %v718 = vsel %vm706, %v713, %v717
      %v720 = vshrl.u32 %v676, 16
      %v722 = vshll.u32 %v676, 16
      %v724 = vrot.slane %v722, 1
      %v725 = vor.u32 %v720, %v724
      %v727 = vshll.u32 %v688, 16
      %v729 = vrot.slane %v727, 1
      %v730 = vsel %vm706, %v725, %v729
      %v732 = vshrl.u32 %v677, 16
      %v734 = vshll.u32 %v677, 16
      %v736 = vrot.slane %v734, 1
      %v737 = vor.u32 %v732, %v736
      %v739 = vshll.u32 %v689, 16
      %v741 = vrot.slane %v739, 1
      %v742 = vsel %vm706, %v737, %v741
      %v744 = vshrl.u32 %v678, 16
      %v746 = vshll.u32 %v678, 16
      %v748 = vrot.slane %v746, 1
      %v749 = vor.u32 %v744, %v748
      %v751 = vshll.u32 %v690, 16
      %v753 = vrot.slane %v751, 1
      %v754 = vsel %vm706, %v749, %v753
      %v756 = vshrl.u32 %v679, 16
      %v758 = vshll.u32 %v679, 16
      %v760 = vrot.slane %v758, 1
      %v761 = vor.u32 %v756, %v760
      %v763 = vshll.u32 %v691, 16
      %v765 = vrot.slane %v763, 1
      %v766 = vsel %vm706, %v761, %v765
      %v768 = vshrl.u32 %v680, 16
      %v770 = vshll.u32 %v680, 16
      %v772 = vrot.slane %v770, 1
      %v773 = vor.u32 %v768, %v772
      %v775 = vshll.u32 %v692, 16
      %v777 = vrot.slane %v775, 1
      %v778 = vsel %vm706, %v773, %v777
      %v780 = vshrl.u32 %v681, 16
      %v782 = vshll.u32 %v681, 16
      %v784 = vrot.slane %v782, 1
      %v785 = vor.u32 %v780, %v784
      %v787 = vshll.u32 %v693, 16
      %v789 = vrot.slane %v787, 1
      %v790 = vsel %vm706, %v785, %v789
      %v792 = vshrl.u32 %v682, 16
      %v794 = vshll.u32 %v682, 16
      %v796 = vrot.slane %v794, 1
      %v797 = vor.u32 %v792, %v796
      %v799 = vshll.u32 %v694, 16
      %v801 = vrot.slane %v799, 1
      %v802 = vsel %vm706, %v797, %v801
      %v804 = vshrl.u32 %v683, 16
      %v806 = vshll.u32 %v683, 16
      %v808 = vrot.slane %v806, 1
      %v809 = vor.u32 %v804, %v808
      %v811 = vshll.u32 %v695, 16
      %v813 = vrot.slane %v811, 1
      %v814 = vsel %vm706, %v809, %v813
      %v816 = vshrl.u32 %v684, 16
      %v818 = vshll.u32 %v684, 16
      %v820 = vrot.slane %v818, 1
      %v821 = vor.u32 %v816, %v820
      %v823 = vshll.u32 %v696, 16
      %v825 = vrot.slane %v823, 1
      %v826 = vsel %vm706, %v821, %v825
      %827 = vrot.lane.b32.xlu0 %v718, 4
      %v828 = vpop.permute.xlu0 %827
      %829 = vrot.lane.b32.xlu0 %v730, 4
      %v830 = vpop.permute.xlu0 %829
      %831 = vrot.lane.b32.xlu0 %v742, 4
      %v832 = vpop.permute.xlu0 %831
      %833 = vrot.lane.b32.xlu0 %v754, 4
      %v834 = vpop.permute.xlu0 %833
      %835 = vrot.lane.b32.xlu0 %v766, 4
      %v836 = vpop.permute.xlu0 %835
      %837 = vrot.lane.b32.xlu0 %v778, 4
      %v838 = vpop.permute.xlu0 %837
      %839 = vrot.lane.b32.xlu0 %v790, 4
      %v840 = vpop.permute.xlu0 %839
      %841 = vrot.lane.b32.xlu0 %v802, 4
      %v842 = vpop.permute.xlu0 %841
      %843 = vrot.lane.b32.xlu0 %v814, 4
      %v844 = vpop.permute.xlu0 %843
      %845 = vrot.lane.b32.xlu0 %v826, 4
      %v846 = vpop.permute.xlu0 %845
      %vm867 = vcmask 1046528
      %v868 = vrot.slane %v675, 1
      %v869 = vrot.slane %v687, 1
      %v870 = vsel %vm867, %v868, %v869
      %v871 = vrot.slane %v676, 1
      %v872 = vrot.slane %v688, 1
      %v873 = vsel %vm867, %v871, %v872
      %v874 = vrot.slane %v677, 1
      %v875 = vrot.slane %v689, 1
      %v876 = vsel %vm867, %v874, %v875
      %v877 = vrot.slane %v678, 1
      %v878 = vrot.slane %v690, 1
      %v879 = vsel %vm867, %v877, %v878
      %v880 = vrot.slane %v679, 1
      %v881 = vrot.slane %v691, 1
      %v882 = vsel %vm867, %v880, %v881
      %v883 = vrot.slane %v680, 1
      %v884 = vrot.slane %v692, 1
      %v885 = vsel %vm867, %v883, %v884
      %v886 = vrot.slane %v681, 1
      %v887 = vrot.slane %v693, 1
      %v888 = vsel %vm867, %v886, %v887
      %v889 = vrot.slane %v682, 1
      %v890 = vrot.slane %v694, 1
      %v891 = vsel %vm867, %v889, %v890
      %v892 = vrot.slane %v683, 1
      %v893 = vrot.slane %v695, 1
      %v894 = vsel %vm867, %v892, %v893
      %v895 = vrot.slane %v684, 1
      %v896 = vrot.slane %v696, 1
      %v897 = vsel %vm867, %v895, %v896
      %898 = vrot.lane.b32.xlu0 %v870, 8
      %v899 = vpop.permute.xlu0 %898
      %900 = vrot.lane.b32.xlu0 %v873, 8
      %v901 = vpop.permute.xlu0 %900
      %902 = vrot.lane.b32.xlu0 %v876, 8
      %v903 = vpop.permute.xlu0 %902
      %904 = vrot.lane.b32.xlu0 %v879, 8
      %v905 = vpop.permute.xlu0 %904
      %906 = vrot.lane.b32.xlu0 %v882, 8
      %v907 = vpop.permute.xlu0 %906
      %908 = vrot.lane.b32.xlu0 %v885, 8
      %v909 = vpop.permute.xlu0 %908
      %910 = vrot.lane.b32.xlu0 %v888, 8
      %v911 = vpop.permute.xlu0 %910
      %912 = vrot.lane.b32.xlu0 %v891, 8
      %v913 = vpop.permute.xlu0 %912
      %914 = vrot.lane.b32.xlu0 %v894, 8
      %v915 = vpop.permute.xlu0 %914
      %916 = vrot.lane.b32.xlu0 %v897, 8
      %v917 = vpop.permute.xlu0 %916
      %919 = vrot.lane.b32.xlu0 %v676, 12
      %v920 = vpop.permute.xlu0 %919
      %921 = vrot.lane.b32.xlu0 %v677, 12
      %v922 = vpop.permute.xlu0 %921
      %923 = vrot.lane.b32.xlu0 %v678, 12
      %v924 = vpop.permute.xlu0 %923
      %925 = vrot.lane.b32.xlu0 %v679, 12
      %v926 = vpop.permute.xlu0 %925
      %927 = vrot.lane.b32.xlu0 %v680, 12
      %v928 = vpop.permute.xlu0 %927
      %929 = vrot.lane.b32.xlu0 %v681, 12
      %v930 = vpop.permute.xlu0 %929
      %931 = vrot.lane.b32.xlu0 %v682, 12
      %v932 = vpop.permute.xlu0 %931
      %933 = vrot.lane.b32.xlu0 %v683, 12
      %v934 = vpop.permute.xlu0 %933
      %935 = vrot.lane.b32.xlu0 %v684, 12
      %v936 = vpop.permute.xlu0 %935
      %937 = vrot.lane.b32.xlu0 %v685, 12
      %v938 = vpop.permute.xlu0 %937
      %v940 = vshrl.u32 %v685, 16
      %v942 = vshll.u32 %v685, 16
      %v944 = vrot.slane %v942, 1
      %v945 = vor.u32 %v940, %v944
      %v947 = vshll.u32 %v697, 16
      %v949 = vrot.slane %v947, 1
      %v950 = vsel %vm706, %v945, %v949
      %951 = vrot.lane.b32.xlu0 %v730, 16
      %v952 = vpop.permute.xlu0 %951
      %953 = vrot.lane.b32.xlu0 %v742, 16
      %v954 = vpop.permute.xlu0 %953
      %955 = vrot.lane.b32.xlu0 %v754, 16
      %v956 = vpop.permute.xlu0 %955
      %957 = vrot.lane.b32.xlu0 %v766, 16
      %v958 = vpop.permute.xlu0 %957
      %959 = vrot.lane.b32.xlu0 %v778, 16
      %v960 = vpop.permute.xlu0 %959
      %961 = vrot.lane.b32.xlu0 %v790, 16
      %v962 = vpop.permute.xlu0 %961
      %963 = vrot.lane.b32.xlu0 %v802, 16
      %v964 = vpop.permute.xlu0 %963
      %965 = vrot.lane.b32.xlu0 %v814, 16
      %v966 = vpop.permute.xlu0 %965
      %967 = vrot.lane.b32.xlu0 %v826, 16
      %v968 = vpop.permute.xlu0 %967
      %969 = vrot.lane.b32.xlu0 %v950, 16
      %v970 = vpop.permute.xlu0 %969
      %v972 = vrot.slane %v685, 1
      %v973 = vrot.slane %v697, 1
      %v974 = vsel %vm867, %v972, %v973
      %975 = vrot.lane.b32.xlu0 %v873, 20
      %v976 = vpop.permute.xlu0 %975
      %977 = vrot.lane.b32.xlu0 %v876, 20
      %v978 = vpop.permute.xlu0 %977
      %979 = vrot.lane.b32.xlu0 %v879, 20
      %v980 = vpop.permute.xlu0 %979
      %981 = vrot.lane.b32.xlu0 %v882, 20
      %v982 = vpop.permute.xlu0 %981
      %983 = vrot.lane.b32.xlu0 %v885, 20
      %v984 = vpop.permute.xlu0 %983
      %985 = vrot.lane.b32.xlu0 %v888, 20
      %v986 = vpop.permute.xlu0 %985
      %987 = vrot.lane.b32.xlu0 %v891, 20
      %v988 = vpop.permute.xlu0 %987
      %989 = vrot.lane.b32.xlu0 %v894, 20
      %v990 = vpop.permute.xlu0 %989
      %991 = vrot.lane.b32.xlu0 %v897, 20
      %v992 = vpop.permute.xlu0 %991
      %993 = vrot.lane.b32.xlu0 %v974, 20
      %v994 = vpop.permute.xlu0 %993
      %996 = vrot.lane.b32.xlu0 %v677, 24
      %v997 = vpop.permute.xlu0 %996
      %998 = vrot.lane.b32.xlu0 %v678, 24
      %v999 = vpop.permute.xlu0 %998
      %1000 = vrot.lane.b32.xlu0 %v679, 24
      %v1001 = vpop.permute.xlu0 %1000
      %1002 = vrot.lane.b32.xlu0 %v680, 24
      %v1003 = vpop.permute.xlu0 %1002
      %1004 = vrot.lane.b32.xlu0 %v681, 24
      %v1005 = vpop.permute.xlu0 %1004
      %1006 = vrot.lane.b32.xlu0 %v682, 24
      %v1007 = vpop.permute.xlu0 %1006
      %1008 = vrot.lane.b32.xlu0 %v683, 24
      %v1009 = vpop.permute.xlu0 %1008
      %1010 = vrot.lane.b32.xlu0 %v684, 24
      %v1011 = vpop.permute.xlu0 %1010
      %1012 = vrot.lane.b32.xlu0 %v685, 24
      %v1013 = vpop.permute.xlu0 %1012
      %1014 = vrot.lane.b32.xlu0 %v686, 24
      %v1015 = vpop.permute.xlu0 %1014
      %v1017 = vshrl.u32 %v686, 16
      %v1019 = vshll.u32 %v686, 16
      %v1021 = vrot.slane %v1019, 1
      %v1022 = vor.u32 %v1017, %v1021
      %v1024 = vshll.u32 %v698, 16
      %v1026 = vrot.slane %v1024, 1
      %v1027 = vsel %vm706, %v1022, %v1026
      %1028 = vrot.lane.b32.xlu0 %v742, 28
      %v1029 = vpop.permute.xlu0 %1028
      %1030 = vrot.lane.b32.xlu0 %v754, 28
      %v1031 = vpop.permute.xlu0 %1030
      %1032 = vrot.lane.b32.xlu0 %v766, 28
      %v1033 = vpop.permute.xlu0 %1032
      %1034 = vrot.lane.b32.xlu0 %v778, 28
      %v1035 = vpop.permute.xlu0 %1034
      %1036 = vrot.lane.b32.xlu0 %v790, 28
      %v1037 = vpop.permute.xlu0 %1036
      %1038 = vrot.lane.b32.xlu0 %v802, 28
      %v1039 = vpop.permute.xlu0 %1038
      %1040 = vrot.lane.b32.xlu0 %v814, 28
      %v1041 = vpop.permute.xlu0 %1040
      %1042 = vrot.lane.b32.xlu0 %v826, 28
      %v1043 = vpop.permute.xlu0 %1042
      %1044 = vrot.lane.b32.xlu0 %v950, 28
      %v1045 = vpop.permute.xlu0 %1044
      %1046 = vrot.lane.b32.xlu0 %v1027, 28
      %v1047 = vpop.permute.xlu0 %1046
      %v1049 = vrot.slane %v686, 1
      %v1050 = vrot.slane %v698, 1
      %v1051 = vsel %vm867, %v1049, %v1050
      %1052 = vrot.lane.b32.xlu0 %v876, 32
      %v1053 = vpop.permute.xlu0 %1052
      %1054 = vrot.lane.b32.xlu0 %v879, 32
      %v1055 = vpop.permute.xlu0 %1054
      %1056 = vrot.lane.b32.xlu0 %v882, 32
      %v1057 = vpop.permute.xlu0 %1056
      %1058 = vrot.lane.b32.xlu0 %v885, 32
      %v1059 = vpop.permute.xlu0 %1058
      %1060 = vrot.lane.b32.xlu0 %v888, 32
      %v1061 = vpop.permute.xlu0 %1060
      %1062 = vrot.lane.b32.xlu0 %v891, 32
      %v1063 = vpop.permute.xlu0 %1062
      %1064 = vrot.lane.b32.xlu0 %v894, 32
      %v1065 = vpop.permute.xlu0 %1064
      %1066 = vrot.lane.b32.xlu0 %v897, 32
      %v1067 = vpop.permute.xlu0 %1066
      %1068 = vrot.lane.b32.xlu0 %v974, 32
      %v1069 = vpop.permute.xlu0 %1068
      %1070 = vrot.lane.b32.xlu0 %v1051, 32
      %v1071 = vpop.permute.xlu0 %1070
      %vm1072 = vcmask 31744
      %v1074 = vsel %vm1072, %v675, %v828
      %v1076 = vsel %vm1072, %v676, %v830
      %v1078 = vsel %vm1072, %v677, %v832
      %v1080 = vsel %vm1072, %v678, %v834
      %v1082 = vsel %vm1072, %v679, %v836
      %v1084 = vsel %vm1072, %v680, %v838
      %v1086 = vsel %vm1072, %v681, %v840
      %v1088 = vsel %vm1072, %v682, %v842
      %v1090 = vsel %vm1072, %v683, %v844
      %v1092 = vsel %vm1072, %v684, %v846
      %vm1093 = vcmask 64512
      %v1095 = vsel %vm1093, %v1074, %v899
      %v1097 = vsel %vm1093, %v1076, %v901
      %v1099 = vsel %vm1093, %v1078, %v903
      %v1101 = vsel %vm1093, %v1080, %v905
      %v1103 = vsel %vm1093, %v1082, %v907
      %v1105 = vsel %vm1093, %v1084, %v909
      %v1107 = vsel %vm1093, %v1086, %v911
      %v1109 = vsel %vm1093, %v1088, %v913
      %v1111 = vsel %vm1093, %v1090, %v915
      %v1113 = vsel %vm1093, %v1092, %v917
      %vm1114 = vcmask 97280
      %v1116 = vsel %vm1114, %v1095, %v920
      %v1118 = vsel %vm1114, %v1097, %v922
      %v1120 = vsel %vm1114, %v1099, %v924
      %v1122 = vsel %vm1114, %v1101, %v926
      %v1124 = vsel %vm1114, %v1103, %v928
      %v1126 = vsel %vm1114, %v1105, %v930
      %v1128 = vsel %vm1114, %v1107, %v932
      %v1130 = vsel %vm1114, %v1109, %v934
      %v1132 = vsel %vm1114, %v1111, %v936
      %v1134 = vsel %vm1114, %v1113, %v938
      %vm1135 = vcmask 130048
      %v1137 = vsel %vm1135, %v1116, %v952
      %v1139 = vsel %vm1135, %v1118, %v954
      %v1141 = vsel %vm1135, %v1120, %v956
      %v1143 = vsel %vm1135, %v1122, %v958
      %v1145 = vsel %vm1135, %v1124, %v960
      %v1147 = vsel %vm1135, %v1126, %v962
      %v1149 = vsel %vm1135, %v1128, %v964
      %v1151 = vsel %vm1135, %v1130, %v966
      %v1153 = vsel %vm1135, %v1132, %v968
      %v1155 = vsel %vm1135, %v1134, %v970
      %vm1156 = vcmask 162816
      %v1158 = vsel %vm1156, %v1137, %v976
      %v1160 = vsel %vm1156, %v1139, %v978
      %v1162 = vsel %vm1156, %v1141, %v980
      %v1164 = vsel %vm1156, %v1143, %v982
      %v1166 = vsel %vm1156, %v1145, %v984
      %v1168 = vsel %vm1156, %v1147, %v986
      %v1170 = vsel %vm1156, %v1149, %v988
      %v1172 = vsel %vm1156, %v1151, %v990
      %v1174 = vsel %vm1156, %v1153, %v992
      %v1176 = vsel %vm1156, %v1155, %v994
      %vm1177 = vcmask 195584
      %v1179 = vsel %vm1177, %v1158, %v997
      %v1181 = vsel %vm1177, %v1160, %v999
      %v1183 = vsel %vm1177, %v1162, %v1001
      %v1185 = vsel %vm1177, %v1164, %v1003
      %v1187 = vsel %vm1177, %v1166, %v1005
      %v1189 = vsel %vm1177, %v1168, %v1007
      %v1191 = vsel %vm1177, %v1170, %v1009
      %v1193 = vsel %vm1177, %v1172, %v1011
      %v1195 = vsel %vm1177, %v1174, %v1013
      %v1197 = vsel %vm1177, %v1176, %v1015
      %vm1198 = vcmask 228352
      %v1200 = vsel %vm1198, %v1179, %v1029
      %v1202 = vsel %vm1198, %v1181, %v1031
      %v1204 = vsel %vm1198, %v1183, %v1033
      %v1206 = vsel %vm1198, %v1185, %v1035
      %v1208 = vsel %vm1198, %v1187, %v1037
      %v1210 = vsel %vm1198, %v1189, %v1039
      %v1212 = vsel %vm1198, %v1191, %v1041
      %v1214 = vsel %vm1198, %v1193, %v1043
      %v1216 = vsel %vm1198, %v1195, %v1045
      %v1218 = vsel %vm1198, %v1197, %v1047
      %vm1219 = vcmask 261120
      %v1221 = vsel %vm1219, %v1200, %v1053
      %v1223 = vsel %vm1219, %v1202, %v1055
      %v1225 = vsel %vm1219, %v1204, %v1057
      %v1227 = vsel %vm1219, %v1206, %v1059
      %v1229 = vsel %vm1219, %v1208, %v1061
      %v1231 = vsel %vm1219, %v1210, %v1063
      %v1233 = vsel %vm1219, %v1212, %v1065
      %v1235 = vsel %vm1219, %v1214, %v1067
      %v1237 = vsel %vm1219, %v1216, %v1069
      %v1239 = vsel %vm1219, %v1218, %v1071
      %v1245 = vunpack.c.l.b16 %v699
      %v1246 = vunpack.c.l.b16 %v700
      %v1247 = vunpack.c.l.b16 %v701
      %v1248 = vunpack.c.l.b16 %v702
      %v1249 = vunpack.c.l.b16 %v703
      %v1250 = vpack.c.b16 %v1246, %v1245
      %v1251 = vpack.c.b16 %v1248, %v1247
      %v1252 = vpack.c.b16 %v1249, %v1249
      %vm1255 = vcmask 293888
      %v1256 = vsel %vm1255, %v1221, 0
      %v1258 = vsel %vm1255, %v1223, 0
      %v1260 = vsel %vm1255, %v1225, 0
      %v1262 = vsel %vm1255, %v1227, 0
      %v1264 = vsel %vm1255, %v1229, 0
      %v1266 = vsel %vm1255, %v1231, 0
      %v1268 = vsel %vm1255, %v1233, 0
      %v1270 = vsel %vm1255, %v1235, 0
      %v1272 = vsel %vm1255, %v1237, 0
      %v1274 = vsel %vm1255, %v1239, 0
      %vm1276 = vcmask 1041408
      %v1278 = vsel %vm1276, %v1252, 0
      %1280 = vmatprep.subr.bf16.mxu0 0
      %1281 = vmatpush1.bf16.msra.mxu0 %v1250
      %1282 = vmatprep.subr.bf16.mxu0 0
      %1283 = vmatpush1.bf16.msra.mxu0 %v1251
      %1284 = vmatprep.subr.bf16.mxu0 0
      %1285 = vmatpush1.bf16.msra.mxu0 %v1278
      %1286 = vmatprep.subr.bf16.mxu0 0
      %1287 = vmatpush1.bf16.msra.mxu0 0
      %1288 = vmatprep.subr.bf16.mxu0 0
      %1289 = vmatpush1.bf16.msra.mxu0 0
      %1290 = vmatprep.subr.bf16.mxu0 0
      %1291 = vmatpush1.bf16.msra.mxu0 0
      %1292 = vmatprep.subr.bf16.mxu0 0
      %1293 = vmatpush1.bf16.msra.mxu0 0
      %1294 = vmatprep.subr.bf16.mxu0 0
      %1295 = vmatpush1.bf16.msra.mxu0 0
      %1296 = vmatprep.subr.bf16.mxu0 0
      %1297 = vmatpush1.bf16.msra.mxu0 0
      %1298 = vmatprep.subr.bf16.mxu0 0
      %1299 = vmatpush1.bf16.msra.mxu0 0
      %1300 = vmatprep.subr.bf16.mxu0 0
      %1301 = vmatpush1.bf16.msra.mxu0 0
      %1302 = vmatprep.subr.bf16.mxu0 0
      %1303 = vmatpush1.bf16.msra.mxu0 0
      %1304 = vmatprep.subr.bf16.mxu0 0
      %1305 = vmatpush1.bf16.msra.mxu0 0
      %1306 = vmatprep.subr.bf16.mxu0 0
      %1307 = vmatpush1.bf16.msra.mxu0 0
      %1308 = vmatprep.subr.bf16.mxu0 0
      %1309 = vmatpush1.bf16.msra.mxu0 0
      %1310 = vmatprep.subr.bf16.mxu0 0
      %1311 = vmatpush1.bf16.msra.mxu0 0
      %1312 = vmatprep.mubr.bf16.mxu0 0
      %1313 = vmatmul.mubr.bf16.gmra.mrb[0].mxu0 %v1256
      %v1314 = vpop.f32.mrb[0].mxu0
      %v1315 = vadd.f32 0.0, %v1314
      %v1316 = vpop.f32.mrb[0].mxu0
      %v1317 = vpop.f32.mrb[0].mxu0
      %v1318 = vadd.f32 0.0, %v1317
      %v1319 = vpop.f32.mrb[0].mxu0
      %1320 = vmatprep.mubr.bf16.mxu0 0
      %1321 = vmatmul.mubr.bf16.gmra.mrb[0].mxu0 %v1258
      %v1322 = vpop.f32.mrb[0].mxu0
      %v1323 = vadd.f32 0.0, %v1322
      %v1324 = vpop.f32.mrb[0].mxu0
      %v1325 = vpop.f32.mrb[0].mxu0
      %v1326 = vadd.f32 0.0, %v1325
      %v1327 = vpop.f32.mrb[0].mxu0
      %1328 = vmatprep.mubr.bf16.mxu0 0
      %1329 = vmatmul.mubr.bf16.gmra.mrb[0].mxu0 %v1260
      %v1330 = vpop.f32.mrb[0].mxu0
      %v1331 = vadd.f32 0.0, %v1330
      %v1332 = vpop.f32.mrb[0].mxu0
      %v1333 = vpop.f32.mrb[0].mxu0
      %v1334 = vadd.f32 0.0, %v1333
      %v1335 = vpop.f32.mrb[0].mxu0
      %1336 = vmatprep.mubr.bf16.mxu0 0
      %1337 = vmatmul.mubr.bf16.gmra.mrb[0].mxu0 %v1262
      %v1338 = vpop.f32.mrb[0].mxu0
      %v1339 = vadd.f32 0.0, %v1338
      %v1340 = vpop.f32.mrb[0].mxu0
      %v1341 = vpop.f32.mrb[0].mxu0
      %v1342 = vadd.f32 0.0, %v1341
      %v1343 = vpop.f32.mrb[0].mxu0
      %1344 = vmatprep.mubr.bf16.mxu0 0
      %1345 = vmatmul.mubr.bf16.gmra.mrb[0].mxu0 %v1264
      %v1346 = vpop.f32.mrb[0].mxu0
      %v1347 = vadd.f32 0.0, %v1346
      %v1348 = vpop.f32.mrb[0].mxu0
      %v1349 = vpop.f32.mrb[0].mxu0
      %v1350 = vadd.f32 0.0, %v1349
      %v1351 = vpop.f32.mrb[0].mxu0
      %1352 = vmatprep.mubr.bf16.mxu0 0
      %1353 = vmatmul.mubr.bf16.gmra.mrb[0].mxu0 %v1266
      %v1354 = vpop.f32.mrb[0].mxu0
      %v1355 = vadd.f32 0.0, %v1354
      %v1356 = vpop.f32.mrb[0].mxu0
      %v1357 = vpop.f32.mrb[0].mxu0
      %v1358 = vadd.f32 0.0, %v1357
      %v1359 = vpop.f32.mrb[0].mxu0
      %1360 = vmatprep.mubr.bf16.mxu0 0
      %1361 = vmatmul.mubr.bf16.gmra.mrb[0].mxu0 %v1268
      %v1362 = vpop.f32.mrb[0].mxu0
      %v1363 = vadd.f32 0.0, %v1362
      %v1364 = vpop.f32.mrb[0].mxu0
      %v1365 = vpop.f32.mrb[0].mxu0
      %v1366 = vadd.f32 0.0, %v1365
      %v1367 = vpop.f32.mrb[0].mxu0
      %1368 = vmatprep.mubr.bf16.mxu0 0
      %1369 = vmatmul.mubr.bf16.gmra.mrb[0].mxu0 %v1270
      %v1370 = vpop.f32.mrb[0].mxu0
      %v1371 = vadd.f32 0.0, %v1370
      %v1372 = vpop.f32.mrb[0].mxu0
      %v1373 = vpop.f32.mrb[0].mxu0
      %v1374 = vadd.f32 0.0, %v1373
      %v1375 = vpop.f32.mrb[0].mxu0
      %1376 = vmatprep.mubr.bf16.mxu0 0
      %1377 = vmatmul.mubr.bf16.gmra.mrb[0].mxu0 %v1272
      %v1378 = vpop.f32.mrb[0].mxu0
      %v1379 = vadd.f32 0.0, %v1378
      %v1380 = vpop.f32.mrb[0].mxu0
      %v1381 = vpop.f32.mrb[0].mxu0
      %v1382 = vadd.f32 0.0, %v1381
      %v1383 = vpop.f32.mrb[0].mxu0
      %1384 = vmatprep.mubr.bf16.mxu0 0
      %1385 = vmatmul.mubr.bf16.gmra.mrb[0].mxu0 %v1274
      %v1386 = vpop.f32.mrb[0].mxu0
      %v1387 = vadd.f32 0.0, %v1386
      %v1388 = vpop.f32.mrb[0].mxu0
      %v1389 = vpop.f32.mrb[0].mxu0
      %v1390 = vadd.f32 0.0, %v1389
      %v1391 = vpop.f32.mrb[0].mxu0
      %1392 = vdwg.mxu0
      %v1394 = vlaneseq
      %v1395 = vshrl.u32 %v1394, 7
      %v1396 = vsub.s32 0, %v1395
      %v1397 = vrot.slane %v704, %v1396
      %v1399 = vmul.f32 %v1315, %v1397
      %v1400 = vmul.f32 %v1318, %v1397
      %v1401 = vmul.f32 %v1323, %v1397
      %v1402 = vmul.f32 %v1326, %v1397
      %v1403 = vmul.f32 %v1331, %v1397
      %v1404 = vmul.f32 %v1334, %v1397
      %v1405 = vmul.f32 %v1339, %v1397
      %v1406 = vmul.f32 %v1342, %v1397
      %v1407 = vmul.f32 %v1347, %v1397
      %v1408 = vmul.f32 %v1350, %v1397
      %v1409 = vmul.f32 %v1355, %v1397
      %v1410 = vmul.f32 %v1358, %v1397
      %v1411 = vmul.f32 %v1363, %v1397
      %v1412 = vmul.f32 %v1366, %v1397
      %v1413 = vmul.f32 %v1371, %v1397
      %v1414 = vmul.f32 %v1374, %v1397
      %v1415 = vmul.f32 %v1379, %v1397
      %v1416 = vmul.f32 %v1382, %v1397
      %v1417 = vmul.f32 %v1387, %v1397
      %v1418 = vmul.f32 %v1390, %v1397
      %v1420 = vlaneseq
      %v1421 = vshrl.u32 %v1420, 7
      %v1422 = vsub.s32 0, %v1421
      %v1423 = vrot.slane %v705, %v1422
      %v1425 = vadd.f32 %v1399, %v1423
      %v1426 = vadd.f32 %v1400, %v1423
      %v1427 = vadd.f32 %v1401, %v1423
      %v1428 = vadd.f32 %v1402, %v1423
      %v1429 = vadd.f32 %v1403, %v1423
      %v1430 = vadd.f32 %v1404, %v1423
      %v1431 = vadd.f32 %v1405, %v1423
      %v1432 = vadd.f32 %v1406, %v1423
      %v1433 = vadd.f32 %v1407, %v1423
      %v1434 = vadd.f32 %v1408, %v1423
      %v1435 = vadd.f32 %v1409, %v1423
      %v1436 = vadd.f32 %v1410, %v1423
      %v1437 = vadd.f32 %v1411, %v1423
      %v1438 = vadd.f32 %v1412, %v1423
      %v1439 = vadd.f32 %v1413, %v1423
      %v1440 = vadd.f32 %v1414, %v1423
      %v1441 = vadd.f32 %v1415, %v1423
      %v1442 = vadd.f32 %v1416, %v1423
      %v1443 = vadd.f32 %v1417, %v1423
      %v1444 = vadd.f32 %v1418, %v1423
      %v1445 = vmax.f32 %v1425, 0.0
      %v1446 = vmax.f32 %v1426, 0.0
      %v1447 = vmax.f32 %v1427, 0.0
      %v1448 = vmax.f32 %v1428, 0.0
      %v1449 = vmax.f32 %v1429, 0.0
      %v1450 = vmax.f32 %v1430, 0.0
      %v1451 = vmax.f32 %v1431, 0.0
      %v1452 = vmax.f32 %v1432, 0.0
      %v1453 = vmax.f32 %v1433, 0.0
      %v1454 = vmax.f32 %v1434, 0.0
      %v1455 = vmax.f32 %v1435, 0.0
      %v1456 = vmax.f32 %v1436, 0.0
      %v1457 = vmax.f32 %v1437, 0.0
      %v1458 = vmax.f32 %v1438, 0.0
      %v1459 = vmax.f32 %v1439, 0.0
      %v1460 = vmax.f32 %v1440, 0.0
      %v1461 = vmax.f32 %v1441, 0.0
      %v1462 = vmax.f32 %v1442, 0.0
      %v1463 = vmax.f32 %v1443, 0.0
      %v1464 = vmax.f32 %v1444, 0.0
      %v1465 = vsel %vm520, 0.0, %v1445
      %v1466 = vsel %vm520, 0.0, %v1446
      %v1467 = vsel %vm531, 0.0, %v1463
      %v1468 = vsel %vm531, 0.0, %v1464
      %v1469 = vpack.c.bf16 %v1466, %v1465
      %v1470 = vpack.c.bf16 %v1448, %v1447
      %v1471 = vpack.c.bf16 %v1450, %v1449
      %v1472 = vpack.c.bf16 %v1452, %v1451
      %v1473 = vpack.c.bf16 %v1454, %v1453
      %v1474 = vpack.c.bf16 %v1456, %v1455
      %v1475 = vpack.c.bf16 %v1458, %v1457
      %v1476 = vpack.c.bf16 %v1460, %v1459
      %v1477 = vpack.c.bf16 %v1462, %v1461
      %v1478 = vpack.c.bf16 %v1468, %v1467
      %v1480 = vshrl.u32 %v1469, 16
      %v1482 = vrot.slane %v1480, 7
      %v1483 = vshll.u32 %v1469, 16
      %v1485 = vor.u32 %v1482, %v1483
      %v1487 = vshrl.u32 %v1470, 16
      %v1489 = vrot.slane %v1487, 7
      %v1490 = vshll.u32 %v1470, 16
      %v1492 = vor.u32 %v1489, %v1490
      %v1494 = vshrl.u32 %v1471, 16
      %v1496 = vrot.slane %v1494, 7
      %v1497 = vshll.u32 %v1471, 16
      %v1499 = vor.u32 %v1496, %v1497
      %v1501 = vshrl.u32 %v1472, 16
      %v1503 = vrot.slane %v1501, 7
      %v1504 = vshll.u32 %v1472, 16
      %v1506 = vor.u32 %v1503, %v1504
      %v1508 = vshrl.u32 %v1473, 16
      %v1510 = vrot.slane %v1508, 7
      %v1511 = vshll.u32 %v1473, 16
      %v1513 = vor.u32 %v1510, %v1511
      %v1515 = vshrl.u32 %v1474, 16
      %v1517 = vrot.slane %v1515, 7
      %v1518 = vshll.u32 %v1474, 16
      %v1520 = vor.u32 %v1517, %v1518
      %v1522 = vshrl.u32 %v1475, 16
      %v1524 = vrot.slane %v1522, 7
      %v1525 = vshll.u32 %v1475, 16
      %v1527 = vor.u32 %v1524, %v1525
      %v1529 = vshrl.u32 %v1476, 16
      %v1531 = vrot.slane %v1529, 7
      %v1532 = vshll.u32 %v1476, 16
      %v1534 = vor.u32 %v1531, %v1532
      %v1536 = vshrl.u32 %v1477, 16
      %v1538 = vrot.slane %v1536, 7
      %v1539 = vshll.u32 %v1477, 16
      %v1541 = vor.u32 %v1538, %v1539
      %v1543 = vshrl.u32 %v1478, 16
      %v1545 = vrot.slane %v1543, 7
      %v1546 = vshll.u32 %v1478, 16
      %v1548 = vor.u32 %v1545, %v1546
      %v1569 = vsel %vm674, 0, %v1485
      %v1570 = vsel %vm674, 0, %v1492
      %v1571 = vsel %vm674, 0, %v1499
      %v1572 = vsel %vm674, 0, %v1506
      %v1573 = vsel %vm674, 0, %v1513
      %v1574 = vsel %vm674, 0, %v1520
      %v1575 = vsel %vm674, 0, %v1527
      %v1576 = vsel %vm674, 0, %v1534
      %v1577 = vsel %vm674, 0, %v1541
      %v1578 = vsel %vm674, 0, %v1548
      %v1579 = vsel %vm674, %v1482, 0
      %v1580 = vsel %vm674, %v1489, 0
      %v1581 = vsel %vm674, %v1496, 0
      %v1582 = vsel %vm674, %v1503, 0
      %v1583 = vsel %vm674, %v1510, 0
      %v1584 = vsel %vm674, %v1517, 0
      %v1585 = vsel %vm674, %v1524, 0
      %v1586 = vsel %vm674, %v1531, 0
      %v1587 = vsel %vm674, %v1538, 0
      %v1588 = vsel %vm674, %v1545, 0
      %v1589 = vld [vmem:[%s6] sm:$0xf]
      %v1590 = vld [vmem:[%s6 + $0x4] sm:$0xf]
      %v1591 = vld [vmem:[%s6 + $0x8] sm:$0xf]
      %v1592 = vld [vmem:[%s6 + $0xc] sm:$0xf]
      %v1593 = vld [vmem:[%s6 + $0x10] sm:$0x3]
      %v1594 = vld [vmem:[%s7] sm:$0x1]
      %v1595 = vld [vmem:[%s8] sm:$0x1]
      %v1597 = vshrl.u32 %v1569, 16
      %v1599 = vshll.u32 %v1569, 16
      %v1601 = vrot.slane %v1599, 1
      %v1602 = vor.u32 %v1597, %v1601
      %v1604 = vshll.u32 %v1579, 16
      %v1606 = vrot.slane %v1604, 1
      %v1607 = vsel %vm706, %v1602, %v1606
      %v1609 = vshrl.u32 %v1570, 16
      %v1611 = vshll.u32 %v1570, 16
      %v1613 = vrot.slane %v1611, 1
      %v1614 = vor.u32 %v1609, %v1613
      %v1616 = vshll.u32 %v1580, 16
      %v1618 = vrot.slane %v1616, 1
      %v1619 = vsel %vm706, %v1614, %v1618
      %v1621 = vshrl.u32 %v1571, 16
      %v1623 = vshll.u32 %v1571, 16
      %v1625 = vrot.slane %v1623, 1
      %v1626 = vor.u32 %v1621, %v1625
      %v1628 = vshll.u32 %v1581, 16
      %v1630 = vrot.slane %v1628, 1
      %v1631 = vsel %vm706, %v1626, %v1630
      %v1633 = vshrl.u32 %v1572, 16
      %v1635 = vshll.u32 %v1572, 16
      %v1637 = vrot.slane %v1635, 1
      %v1638 = vor.u32 %v1633, %v1637
      %v1640 = vshll.u32 %v1582, 16
      %v1642 = vrot.slane %v1640, 1
      %v1643 = vsel %vm706, %v1638, %v1642
      %v1645 = vshrl.u32 %v1573, 16
      %v1647 = vshll.u32 %v1573, 16
      %v1649 = vrot.slane %v1647, 1
      %v1650 = vor.u32 %v1645, %v1649
      %v1652 = vshll.u32 %v1583, 16
      %v1654 = vrot.slane %v1652, 1
      %v1655 = vsel %vm706, %v1650, %v1654
      %v1657 = vshrl.u32 %v1574, 16
      %v1659 = vshll.u32 %v1574, 16
      %v1661 = vrot.slane %v1659, 1
      %v1662 = vor.u32 %v1657, %v1661
      %v1664 = vshll.u32 %v1584, 16
      %v1666 = vrot.slane %v1664, 1
      %v1667 = vsel %vm706, %v1662, %v1666
      %v1669 = vshrl.u32 %v1575, 16
      %v1671 = vshll.u32 %v1575, 16
      %v1673 = vrot.slane %v1671, 1
      %v1674 = vor.u32 %v1669, %v1673
      %v1676 = vshll.u32 %v1585, 16
      %v1678 = vrot.slane %v1676, 1
      %v1679 = vsel %vm706, %v1674, %v1678
      %v1681 = vshrl.u32 %v1576, 16
      %v1683 = vshll.u32 %v1576, 16
      %v1685 = vrot.slane %v1683, 1
      %v1686 = vor.u32 %v1681, %v1685
      %v1688 = vshll.u32 %v1586, 16
      %v1690 = vrot.slane %v1688, 1
      %v1691 = vsel %vm706, %v1686, %v1690
      %1692 = vrot.lane.b32.xlu0 %v1607, 4
      %v1693 = vpop.permute.xlu0 %1692
      %1694 = vrot.lane.b32.xlu0 %v1619, 4
      %v1695 = vpop.permute.xlu0 %1694
      %1696 = vrot.lane.b32.xlu0 %v1631, 4
      %v1697 = vpop.permute.xlu0 %1696
      %1698 = vrot.lane.b32.xlu0 %v1643, 4
      %v1699 = vpop.permute.xlu0 %1698
      %1700 = vrot.lane.b32.xlu0 %v1655, 4
      %v1701 = vpop.permute.xlu0 %1700
      %1702 = vrot.lane.b32.xlu0 %v1667, 4
      %v1703 = vpop.permute.xlu0 %1702
      %1704 = vrot.lane.b32.xlu0 %v1679, 4
      %v1705 = vpop.permute.xlu0 %1704
      %1706 = vrot.lane.b32.xlu0 %v1691, 4
      %v1707 = vpop.permute.xlu0 %1706
      %v1724 = vrot.slane %v1569, 1
      %v1725 = vrot.slane %v1579, 1
      %v1726 = vsel %vm867, %v1724, %v1725
      %v1727 = vrot.slane %v1570, 1
      %v1728 = vrot.slane %v1580, 1
      %v1729 = vsel %vm867, %v1727, %v1728
      %v1730 = vrot.slane %v1571, 1
      %v1731 = vrot.slane %v1581, 1
      %v1732 = vsel %vm867, %v1730, %v1731
      %v1733 = vrot.slane %v1572, 1
      %v1734 = vrot.slane %v1582, 1
      %v1735 = vsel %vm867, %v1733, %v1734
      %v1736 = vrot.slane %v1573, 1
      %v1737 = vrot.slane %v1583, 1
      %v1738 = vsel %vm867, %v1736, %v1737
      %v1739 = vrot.slane %v1574, 1
      %v1740 = vrot.slane %v1584, 1
      %v1741 = vsel %vm867, %v1739, %v1740
      %v1742 = vrot.slane %v1575, 1
      %v1743 = vrot.slane %v1585, 1
      %v1744 = vsel %vm867, %v1742, %v1743
      %v1745 = vrot.slane %v1576, 1
      %v1746 = vrot.slane %v1586, 1
      %v1747 = vsel %vm867, %v1745, %v1746
      %1748 = vrot.lane.b32.xlu0 %v1726, 8
      %v1749 = vpop.permute.xlu0 %1748
      %1750 = vrot.lane.b32.xlu0 %v1729, 8
      %v1751 = vpop.permute.xlu0 %1750
      %1752 = vrot.lane.b32.xlu0 %v1732, 8
      %v1753 = vpop.permute.xlu0 %1752
      %1754 = vrot.lane.b32.xlu0 %v1735, 8
      %v1755 = vpop.permute.xlu0 %1754
      %1756 = vrot.lane.b32.xlu0 %v1738, 8
      %v1757 = vpop.permute.xlu0 %1756
      %1758 = vrot.lane.b32.xlu0 %v1741, 8
      %v1759 = vpop.permute.xlu0 %1758
      %1760 = vrot.lane.b32.xlu0 %v1744, 8
      %v1761 = vpop.permute.xlu0 %1760
      %1762 = vrot.lane.b32.xlu0 %v1747, 8
      %v1763 = vpop.permute.xlu0 %1762
      %1765 = vrot.lane.b32.xlu0 %v1570, 12
      %v1766 = vpop.permute.xlu0 %1765
      %1767 = vrot.lane.b32.xlu0 %v1571, 12
      %v1768 = vpop.permute.xlu0 %1767
      %1769 = vrot.lane.b32.xlu0 %v1572, 12
      %v1770 = vpop.permute.xlu0 %1769
      %1771 = vrot.lane.b32.xlu0 %v1573, 12
      %v1772 = vpop.permute.xlu0 %1771
      %1773 = vrot.lane.b32.xlu0 %v1574, 12
      %v1774 = vpop.permute.xlu0 %1773
      %1775 = vrot.lane.b32.xlu0 %v1575, 12
      %v1776 = vpop.permute.xlu0 %1775
      %1777 = vrot.lane.b32.xlu0 %v1576, 12
      %v1778 = vpop.permute.xlu0 %1777
      %1779 = vrot.lane.b32.xlu0 %v1577, 12
      %v1780 = vpop.permute.xlu0 %1779
      %v1782 = vshrl.u32 %v1577, 16
      %v1784 = vshll.u32 %v1577, 16
      %v1786 = vrot.slane %v1784, 1
      %v1787 = vor.u32 %v1782, %v1786
      %v1789 = vshll.u32 %v1587, 16
      %v1791 = vrot.slane %v1789, 1
      %v1792 = vsel %vm706, %v1787, %v1791
      %1793 = vrot.lane.b32.xlu0 %v1619, 16
      %v1794 = vpop.permute.xlu0 %1793
      %1795 = vrot.lane.b32.xlu0 %v1631, 16
      %v1796 = vpop.permute.xlu0 %1795
      %1797 = vrot.lane.b32.xlu0 %v1643, 16
      %v1798 = vpop.permute.xlu0 %1797
      %1799 = vrot.lane.b32.xlu0 %v1655, 16
      %v1800 = vpop.permute.xlu0 %1799
      %1801 = vrot.lane.b32.xlu0 %v1667, 16
      %v1802 = vpop.permute.xlu0 %1801
      %1803 = vrot.lane.b32.xlu0 %v1679, 16
      %v1804 = vpop.permute.xlu0 %1803
      %1805 = vrot.lane.b32.xlu0 %v1691, 16
      %v1806 = vpop.permute.xlu0 %1805
      %1807 = vrot.lane.b32.xlu0 %v1792, 16
      %v1808 = vpop.permute.xlu0 %1807
      %v1810 = vrot.slane %v1577, 1
      %v1811 = vrot.slane %v1587, 1
      %v1812 = vsel %vm867, %v1810, %v1811
      %1813 = vrot.lane.b32.xlu0 %v1729, 20
      %v1814 = vpop.permute.xlu0 %1813
      %1815 = vrot.lane.b32.xlu0 %v1732, 20
      %v1816 = vpop.permute.xlu0 %1815
      %1817 = vrot.lane.b32.xlu0 %v1735, 20
      %v1818 = vpop.permute.xlu0 %1817
      %1819 = vrot.lane.b32.xlu0 %v1738, 20
      %v1820 = vpop.permute.xlu0 %1819
      %1821 = vrot.lane.b32.xlu0 %v1741, 20
      %v1822 = vpop.permute.xlu0 %1821
      %1823 = vrot.lane.b32.xlu0 %v1744, 20
      %v1824 = vpop.permute.xlu0 %1823
      %1825 = vrot.lane.b32.xlu0 %v1747, 20
      %v1826 = vpop.permute.xlu0 %1825
      %1827 = vrot.lane.b32.xlu0 %v1812, 20
      %v1828 = vpop.permute.xlu0 %1827
      %1830 = vrot.lane.b32.xlu0 %v1571, 24
      %v1831 = vpop.permute.xlu0 %1830
      %1832 = vrot.lane.b32.xlu0 %v1572, 24
      %v1833 = vpop.permute.xlu0 %1832
      %1834 = vrot.lane.b32.xlu0 %v1573, 24
      %v1835 = vpop.permute.xlu0 %1834
      %1836 = vrot.lane.b32.xlu0 %v1574, 24
      %v1837 = vpop.permute.xlu0 %1836
      %1838 = vrot.lane.b32.xlu0 %v1575, 24
      %v1839 = vpop.permute.xlu0 %1838
      %1840 = vrot.lane.b32.xlu0 %v1576, 24
      %v1841 = vpop.permute.xlu0 %1840
      %1842 = vrot.lane.b32.xlu0 %v1577, 24
      %v1843 = vpop.permute.xlu0 %1842
      %1844 = vrot.lane.b32.xlu0 %v1578, 24
      %v1845 = vpop.permute.xlu0 %1844
      %v1847 = vshrl.u32 %v1578, 16
      %v1849 = vshll.u32 %v1578, 16
      %v1851 = vrot.slane %v1849, 1
      %v1852 = vor.u32 %v1847, %v1851
      %v1854 = vshll.u32 %v1588, 16
      %v1856 = vrot.slane %v1854, 1
      %v1857 = vsel %vm706, %v1852, %v1856
      %1858 = vrot.lane.b32.xlu0 %v1631, 28
      %v1859 = vpop.permute.xlu0 %1858
      %1860 = vrot.lane.b32.xlu0 %v1643, 28
      %v1861 = vpop.permute.xlu0 %1860
      %1862 = vrot.lane.b32.xlu0 %v1655, 28
      %v1863 = vpop.permute.xlu0 %1862
      %1864 = vrot.lane.b32.xlu0 %v1667, 28
      %v1865 = vpop.permute.xlu0 %1864
      %1866 = vrot.lane.b32.xlu0 %v1679, 28
      %v1867 = vpop.permute.xlu0 %1866
      %1868 = vrot.lane.b32.xlu0 %v1691, 28
      %v1869 = vpop.permute.xlu0 %1868
      %1870 = vrot.lane.b32.xlu0 %v1792, 28
      %v1871 = vpop.permute.xlu0 %1870
      %1872 = vrot.lane.b32.xlu0 %v1857, 28
      %v1873 = vpop.permute.xlu0 %1872
      %v1875 = vrot.slane %v1578, 1
      %v1876 = vrot.slane %v1588, 1
      %v1877 = vsel %vm867, %v1875, %v1876
      %1878 = vrot.lane.b32.xlu0 %v1732, 32
      %v1879 = vpop.permute.xlu0 %1878
      %1880 = vrot.lane.b32.xlu0 %v1735, 32
      %v1881 = vpop.permute.xlu0 %1880
      %1882 = vrot.lane.b32.xlu0 %v1738, 32
      %v1883 = vpop.permute.xlu0 %1882
      %1884 = vrot.lane.b32.xlu0 %v1741, 32
      %v1885 = vpop.permute.xlu0 %1884
      %1886 = vrot.lane.b32.xlu0 %v1744, 32
      %v1887 = vpop.permute.xlu0 %1886
      %1888 = vrot.lane.b32.xlu0 %v1747, 32
      %v1889 = vpop.permute.xlu0 %1888
      %1890 = vrot.lane.b32.xlu0 %v1812, 32
      %v1891 = vpop.permute.xlu0 %1890
      %1892 = vrot.lane.b32.xlu0 %v1877, 32
      %v1893 = vpop.permute.xlu0 %1892
      %v1895 = vsel %vm1072, %v1569, %v1693
      %v1897 = vsel %vm1072, %v1570, %v1695
      %v1899 = vsel %vm1072, %v1571, %v1697
      %v1901 = vsel %vm1072, %v1572, %v1699
      %v1903 = vsel %vm1072, %v1573, %v1701
      %v1905 = vsel %vm1072, %v1574, %v1703
      %v1907 = vsel %vm1072, %v1575, %v1705
      %v1909 = vsel %vm1072, %v1576, %v1707
      %v1911 = vsel %vm1093, %v1895, %v1749
      %v1913 = vsel %vm1093, %v1897, %v1751
      %v1915 = vsel %vm1093, %v1899, %v1753
      %v1917 = vsel %vm1093, %v1901, %v1755
      %v1919 = vsel %vm1093, %v1903, %v1757
      %v1921 = vsel %vm1093, %v1905, %v1759
      %v1923 = vsel %vm1093, %v1907, %v1761
      %v1925 = vsel %vm1093, %v1909, %v1763
      %v1927 = vsel %vm1114, %v1911, %v1766
      %v1929 = vsel %vm1114, %v1913, %v1768
      %v1931 = vsel %vm1114, %v1915, %v1770
      %v1933 = vsel %vm1114, %v1917, %v1772
      %v1935 = vsel %vm1114, %v1919, %v1774
      %v1937 = vsel %vm1114, %v1921, %v1776
      %v1939 = vsel %vm1114, %v1923, %v1778
      %v1941 = vsel %vm1114, %v1925, %v1780
      %v1943 = vsel %vm1135, %v1927, %v1794
      %v1945 = vsel %vm1135, %v1929, %v1796
      %v1947 = vsel %vm1135, %v1931, %v1798
      %v1949 = vsel %vm1135, %v1933, %v1800
      %v1951 = vsel %vm1135, %v1935, %v1802
      %v1953 = vsel %vm1135, %v1937, %v1804
      %v1955 = vsel %vm1135, %v1939, %v1806
      %v1957 = vsel %vm1135, %v1941, %v1808
      %v1959 = vsel %vm1156, %v1943, %v1814
      %v1961 = vsel %vm1156, %v1945, %v1816
      %v1963 = vsel %vm1156, %v1947, %v1818
      %v1965 = vsel %vm1156, %v1949, %v1820
      %v1967 = vsel %vm1156, %v1951, %v1822
      %v1969 = vsel %vm1156, %v1953, %v1824
      %v1971 = vsel %vm1156, %v1955, %v1826
      %v1973 = vsel %vm1156, %v1957, %v1828
      %v1975 = vsel %vm1177, %v1959, %v1831
      %v1977 = vsel %vm1177, %v1961, %v1833
      %v1979 = vsel %vm1177, %v1963, %v1835
      %v1981 = vsel %vm1177, %v1965, %v1837
      %v1983 = vsel %vm1177, %v1967, %v1839
      %v1985 = vsel %vm1177, %v1969, %v1841
      %v1987 = vsel %vm1177, %v1971, %v1843
      %v1989 = vsel %vm1177, %v1973, %v1845
      %v1991 = vsel %vm1198, %v1975, %v1859
      %v1993 = vsel %vm1198, %v1977, %v1861
      %v1995 = vsel %vm1198, %v1979, %v1863
      %v1997 = vsel %vm1198, %v1981, %v1865
      %v1999 = vsel %vm1198, %v1983, %v1867
      %v2001 = vsel %vm1198, %v1985, %v1869
      %v2003 = vsel %vm1198, %v1987, %v1871
      %v2005 = vsel %vm1198, %v1989, %v1873
      %v2007 = vsel %vm1219, %v1991, %v1879
      %v2009 = vsel %vm1219, %v1993, %v1881
      %v2011 = vsel %vm1219, %v1995, %v1883
      %v2013 = vsel %vm1219, %v1997, %v1885
      %v2015 = vsel %vm1219, %v1999, %v1887
      %v2017 = vsel %vm1219, %v2001, %v1889
      %v2019 = vsel %vm1219, %v2003, %v1891
      %v2021 = vsel %vm1219, %v2005, %v1893
      %v2027 = vunpack.c.l.b16 %v1589
      %v2028 = vunpack.c.l.b16 %v1590
      %v2029 = vunpack.c.l.b16 %v1591
      %v2030 = vunpack.c.l.b16 %v1592
      %v2031 = vunpack.c.l.b16 %v1593
      %v2032 = vpack.c.b16 %v2028, %v2027
      %v2033 = vpack.c.b16 %v2030, %v2029
      %v2034 = vpack.c.b16 %v2031, %v2031
      %v2037 = vsel %vm1255, %v2007, 0
      %v2039 = vsel %vm1255, %v2009, 0
      %v2041 = vsel %vm1255, %v2011, 0
      %v2043 = vsel %vm1255, %v2013, 0
      %v2045 = vsel %vm1255, %v2015, 0
      %v2047 = vsel %vm1255, %v2017, 0
      %v2049 = vsel %vm1255, %v2019, 0
      %v2051 = vsel %vm1255, %v2021, 0
      %v2054 = vsel %vm1276, %v2034, 0
      %2056 = vmatprep.subr.bf16.mxu0 0
      %2057 = vmatpush1.bf16.msra.mxu0 %v2032
      %2058 = vmatprep.subr.bf16.mxu0 0
      %2059 = vmatpush1.bf16.msra.mxu0 %v2033
      %2060 = vmatprep.subr.bf16.mxu0 0
      %2061 = vmatpush1.bf16.msra.mxu0 %v2054
      %2062 = vmatprep.subr.bf16.mxu0 0
      %2063 = vmatpush1.bf16.msra.mxu0 0
      %2064 = vmatprep.subr.bf16.mxu0 0
      %2065 = vmatpush1.bf16.msra.mxu0 0
      %2066 = vmatprep.subr.bf16.mxu0 0
      %2067 = vmatpush1.bf16.msra.mxu0 0
      %2068 = vmatprep.subr.bf16.mxu0 0
      %2069 = vmatpush1.bf16.msra.mxu0 0
      %2070 = vmatprep.subr.bf16.mxu0 0
      %2071 = vmatpush1.bf16.msra.mxu0 0
      %2072 = vmatprep.subr.bf16.mxu0 0
      %2073 = vmatpush1.bf16.msra.mxu0 0
      %2074 = vmatprep.subr.bf16.mxu0 0
      %2075 = vmatpush1.bf16.msra.mxu0 0
      %2076 = vmatprep.subr.bf16.mxu0 0
      %2077 = vmatpush1.bf16.msra.mxu0 0
      %2078 = vmatprep.subr.bf16.mxu0 0
      %2079 = vmatpush1.bf16.msra.mxu0 0
      %2080 = vmatprep.subr.bf16.mxu0 0
      %2081 = vmatpush1.bf16.msra.mxu0 0
      %2082 = vmatprep.subr.bf16.mxu0 0
      %2083 = vmatpush1.bf16.msra.mxu0 0
      %2084 = vmatprep.subr.bf16.mxu0 0
      %2085 = vmatpush1.bf16.msra.mxu0 0
      %2086 = vmatprep.subr.bf16.mxu0 0
      %2087 = vmatpush1.bf16.msra.mxu0 0
      %2088 = vmatprep.mubr.bf16.mxu0 0
      %2089 = vmatmul.mubr.bf16.gmra.mrb[0].mxu0 %v2037
      %v2090 = vpop.f32.mrb[0].mxu0
      %v2091 = vadd.f32 0.0, %v2090
      %v2092 = vpop.f32.mrb[0].mxu0
      %v2093 = vpop.f32.mrb[0].mxu0
      %v2094 = vadd.f32 0.0, %v2093
      %v2095 = vpop.f32.mrb[0].mxu0
      %2096 = vmatprep.mubr.bf16.mxu0 0
      %2097 = vmatmul.mubr.bf16.gmra.mrb[0].mxu0 %v2039
      %v2098 = vpop.f32.mrb[0].mxu0
      %v2099 = vadd.f32 0.0, %v2098
      %v2100 = vpop.f32.mrb[0].mxu0
      %v2101 = vpop.f32.mrb[0].mxu0
      %v2102 = vadd.f32 0.0, %v2101
      %v2103 = vpop.f32.mrb[0].mxu0
      %2104 = vmatprep.mubr.bf16.mxu0 0
      %2105 = vmatmul.mubr.bf16.gmra.mrb[0].mxu0 %v2041
      %v2106 = vpop.f32.mrb[0].mxu0
      %v2107 = vadd.f32 0.0, %v2106
      %v2108 = vpop.f32.mrb[0].mxu0
      %v2109 = vpop.f32.mrb[0].mxu0
      %v2110 = vadd.f32 0.0, %v2109
      %v2111 = vpop.f32.mrb[0].mxu0
      %2112 = vmatprep.mubr.bf16.mxu0 0
      %2113 = vmatmul.mubr.bf16.gmra.mrb[0].mxu0 %v2043
      %v2114 = vpop.f32.mrb[0].mxu0
      %v2115 = vadd.f32 0.0, %v2114
      %v2116 = vpop.f32.mrb[0].mxu0
      %v2117 = vpop.f32.mrb[0].mxu0
      %v2118 = vadd.f32 0.0, %v2117
      %v2119 = vpop.f32.mrb[0].mxu0
      %2120 = vmatprep.mubr.bf16.mxu0 0
      %2121 = vmatmul.mubr.bf16.gmra.mrb[0].mxu0 %v2045
      %v2122 = vpop.f32.mrb[0].mxu0
      %v2123 = vadd.f32 0.0, %v2122
      %v2124 = vpop.f32.mrb[0].mxu0
      %v2125 = vpop.f32.mrb[0].mxu0
      %v2126 = vadd.f32 0.0, %v2125
      %v2127 = vpop.f32.mrb[0].mxu0
      %2128 = vmatprep.mubr.bf16.mxu0 0
      %2129 = vmatmul.mubr.bf16.gmra.mrb[0].mxu0 %v2047
      %v2130 = vpop.f32.mrb[0].mxu0
      %v2131 = vadd.f32 0.0, %v2130
      %v2132 = vpop.f32.mrb[0].mxu0
      %v2133 = vpop.f32.mrb[0].mxu0
      %v2134 = vadd.f32 0.0, %v2133
      %v2135 = vpop.f32.mrb[0].mxu0
      %2136 = vmatprep.mubr.bf16.mxu0 0
      %2137 = vmatmul.mubr.bf16.gmra.mrb[0].mxu0 %v2049
      %v2138 = vpop.f32.mrb[0].mxu0
      %v2139 = vadd.f32 0.0, %v2138
      %v2140 = vpop.f32.mrb[0].mxu0
      %v2141 = vpop.f32.mrb[0].mxu0
      %v2142 = vadd.f32 0.0, %v2141
      %v2143 = vpop.f32.mrb[0].mxu0
      %2144 = vmatprep.mubr.bf16.mxu0 0
      %2145 = vmatmul.mubr.bf16.gmra.mrb[0].mxu0 %v2051
      %v2146 = vpop.f32.mrb[0].mxu0
      %v2147 = vadd.f32 0.0, %v2146
      %v2148 = vpop.f32.mrb[0].mxu0
      %v2149 = vpop.f32.mrb[0].mxu0
      %v2150 = vadd.f32 0.0, %v2149
      %v2151 = vpop.f32.mrb[0].mxu0
      %2152 = vdwg.mxu0
      %v2154 = vlaneseq
      %v2155 = vshrl.u32 %v2154, 7
      %v2156 = vsub.s32 0, %v2155
      %v2157 = vrot.slane %v1594, %v2156
      %v2159 = vmul.f32 %v2091, %v2157
      %v2160 = vmul.f32 %v2094, %v2157
      %v2161 = vmul.f32 %v2099, %v2157
      %v2162 = vmul.f32 %v2102, %v2157
      %v2163 = vmul.f32 %v2107, %v2157
      %v2164 = vmul.f32 %v2110, %v2157
      %v2165 = vmul.f32 %v2115, %v2157
      %v2166 = vmul.f32 %v2118, %v2157
      %v2167 = vmul.f32 %v2123, %v2157
      %v2168 = vmul.f32 %v2126, %v2157
      %v2169 = vmul.f32 %v2131, %v2157
      %v2170 = vmul.f32 %v2134, %v2157
      %v2171 = vmul.f32 %v2139, %v2157
      %v2172 = vmul.f32 %v2142, %v2157
      %v2173 = vmul.f32 %v2147, %v2157
      %v2174 = vmul.f32 %v2150, %v2157
      %v2176 = vlaneseq
      %v2177 = vshrl.u32 %v2176, 7
      %v2178 = vsub.s32 0, %v2177
      %v2179 = vrot.slane %v1595, %v2178
      %v2181 = vadd.f32 %v2159, %v2179
      %v2182 = vadd.f32 %v2160, %v2179
      %v2183 = vadd.f32 %v2161, %v2179
      %v2184 = vadd.f32 %v2162, %v2179
      %v2185 = vadd.f32 %v2163, %v2179
      %v2186 = vadd.f32 %v2164, %v2179
      %v2187 = vadd.f32 %v2165, %v2179
      %v2188 = vadd.f32 %v2166, %v2179
      %v2189 = vadd.f32 %v2167, %v2179
      %v2190 = vadd.f32 %v2168, %v2179
      %v2191 = vadd.f32 %v2169, %v2179
      %v2192 = vadd.f32 %v2170, %v2179
      %v2193 = vadd.f32 %v2171, %v2179
      %v2194 = vadd.f32 %v2172, %v2179
      %v2195 = vadd.f32 %v2173, %v2179
      %v2196 = vadd.f32 %v2174, %v2179
      %v2197 = vmax.f32 %v2181, 0.0
      %v2198 = vmax.f32 %v2182, 0.0
      %v2199 = vmax.f32 %v2183, 0.0
      %v2200 = vmax.f32 %v2184, 0.0
      %v2201 = vmax.f32 %v2185, 0.0
      %v2202 = vmax.f32 %v2186, 0.0
      %v2203 = vmax.f32 %v2187, 0.0
      %v2204 = vmax.f32 %v2188, 0.0
      %v2205 = vmax.f32 %v2189, 0.0
      %v2206 = vmax.f32 %v2190, 0.0
      %v2207 = vmax.f32 %v2191, 0.0
      %v2208 = vmax.f32 %v2192, 0.0
      %v2209 = vmax.f32 %v2193, 0.0
      %v2210 = vmax.f32 %v2194, 0.0
      %v2211 = vmax.f32 %v2195, 0.0
      %v2212 = vmax.f32 %v2196, 0.0
      %2213 = vst.msk [vmem:[%s509] sm:$0xff] %vm1072, %v2197
      %2214 = vst.msk [vmem:[%s509 + $0x8] sm:$0xff] %vm1072, %v2198
      %2215 = vst.msk [vmem:[%s509 + $0x10] sm:$0xff] %vm1072, %v2199
      %2216 = vst.msk [vmem:[%s509 + $0x18] sm:$0xff] %vm1072, %v2200
      %2217 = vst.msk [vmem:[%s509 + $0x20] sm:$0xff] %vm1072, %v2201
      %2218 = vst.msk [vmem:[%s509 + $0x28] sm:$0xff] %vm1072, %v2202
      %2219 = vst.msk [vmem:[%s509 + $0x30] sm:$0xff] %vm1072, %v2203
      %2220 = vst.msk [vmem:[%s509 + $0x38] sm:$0xff] %vm1072, %v2204
      %2221 = vst.msk [vmem:[%s509 + $0x40] sm:$0xff] %vm1072, %v2205
      %2222 = vst.msk [vmem:[%s509 + $0x48] sm:$0xff] %vm1072, %v2206
      %2223 = vst.msk [vmem:[%s509 + $0x50] sm:$0xff] %vm1072, %v2207
      %2224 = vst.msk [vmem:[%s509 + $0x58] sm:$0xff] %vm1072, %v2208
      %2225 = vst.msk [vmem:[%s509 + $0x60] sm:$0xff] %vm1072, %v2209
      %2226 = vst.msk [vmem:[%s509 + $0x68] sm:$0xff] %vm1072, %v2210
      %2227 = vst.msk [vmem:[%s509 + $0x70] sm:$0xff] %vm1072, %v2211
      %2228 = vst.msk [vmem:[%s509 + $0x78] sm:$0xff] %vm1072, %v2212
      %s2229 = smul.u32 8, %s25
      %p2230 = scmp.lt.s32.totalorder %s24, 1
      %s2231 = scalar_select %p2230, %s24, 1
      %p2232 = scmp.lt.s32.totalorder %s2229, 15
      %s2233 = scalar_select %p2232, %s2229, 15
      %s2234 = smul.addr %s2233, 2
      %s2235 = smul.addr %s2231, 32
      %s2236 = sadd.s32 %s2234, %s2235
      %s2237 = smul.addr %s2236, 8
      %s2238 = scalar_lea.vmem %s9, %s2237
      // Predicated region
      $region57: #{tpu_custom_call.1} parent=55 // pred_check
        %p2239 = pneg %p278
      $region58: #{tpu_custom_call.1} parent=55 // pred_check_branch
        %2241 = sbr.rel (%p2239) target = $region60
      $region59: #{tpu_custom_call.1} parent=55 // pred_region
        %s2242 = smul.u32 8, %s25
      $region60: #{tpu_custom_call.1} parent=55 // pred_fallthru
        _
    $region56: #{tpu_custom_call.1} parent=5 // pred_fallthru
      _
    %p2243 = scmp.le.s32.totalorder 2, %s15
    // Predicated region
    $region61: #{tpu_custom_call.1} parent=5 // pred_check
      %p2244 = pneg %p2243
    $region62: #{tpu_custom_call.1} parent=5 // pred_check_branch
      %2246 = sbr.rel (%p2244) target = $region64
    $region63: #{tpu_custom_call.1} parent=5 // pred_region
      %s2247 = ssub.s32 %s15, 2
      // Predicated region
      $region65: #{tpu_custom_call.1} parent=63 // pred_check
        %p2248 = pneg %p284
      $region66: #{tpu_custom_call.1} parent=63 // pred_check_branch
        %2250 = sbr.rel (%p2248) target = $region68
      $region67: #{tpu_custom_call.1} parent=63 // pred_region
        %s2251 = smul.u32 8, %s27
        %p2252 = scmp.lt.s32.totalorder %s26, 1
        %s2253 = scalar_select %p2252, %s26, 1
        %p2254 = scmp.lt.s32.totalorder %s2251, 15
        %s2255 = scalar_select %p2254, %s2251, 15
        %s2256 = smul.addr %s2255, 2
        %s2257 = smul.addr %s2253, 32
        %s2258 = sadd.s32 %s2256, %s2257
        %s2259 = smul.addr %s2258, 8
        %s2260 = scalar_lea.vmem %s9, %s2259
      $region68: #{tpu_custom_call.1} parent=63 // pred_fallthru
        _
    $region64: #{tpu_custom_call.1} parent=5 // pred_fallthru
      _
  $region6: #{tpu_custom_call.1} parent=0 // loop_footer
    %s19 = sadd.s32 1, %s15
  $region7: #{tpu_custom_call.1} parent=0 // loop_footer_branch
    %14 = sbr.rel target = $region3
  $region8: #{tpu_custom_call.1} parent=0 // loop_exit
    _

</llo_original>
